<compile_context>
chip_gen: v7x
topology: tpu7x:2x2x1
jax: 0.10.0
libtpu: 0.0.40
codegen_flags: <defaults>
</compile_context>

<pallas_src>
import functools

import jax
import jax.numpy as jnp
import numpy as np
from jax import lax
from jax.experimental import pallas as pl
from jax.experimental.pallas import tpu as pltpu


# ----------------------------------------------------------------------------
# Pallas kernel: one (batch, row-tile) step.
# ----------------------------------------------------------------------------
def _dlink_up_kernel(TH, W, Cm, Cout,
                     b_ref, bh_ref, s_ref,
                     w1_ref, b1_ref,
                     wee_ref, weo_ref, woe_ref, woo_ref, b2_ref,
                     w3_ref, b3_ref,
                     o_ref):
    THW = TH * W
    f32 = jnp.float32
    bf16 = jnp.bfloat16

    # ---- 1x1 conv + BN1 + ReLU (BN folded into w1/b1) on the TH-row tile ----
    x = b_ref[0].astype(bf16)                                      # (THW, Cin)
    h1 = jnp.dot(x, w1_ref[...], preferred_element_type=f32) + b1_ref[...]
    h1 = jnp.maximum(h1, 0.0)                                      # (THW, Cm)

    # ---- same conv on the 1-row halo (first image row of the next tile) ----
    xh = bh_ref[0].astype(bf16)                                    # (W, Cin)
    hh = jnp.dot(xh, w1_ref[...], preferred_element_type=f32) + b1_ref[...]
    hh = jnp.maximum(hh, 0.0)                                      # (W, Cm)
    # Last row-tile: there is no next image row -> halo contribution is zero.
    is_last = pl.program_id(1) == pl.num_programs(1) - 1
    hh = hh * (1.0 - is_last.astype(f32))

    # ---- shifted neighbour views for ConvTranspose(3, stride=2, p=1, op=1) --
    idx = lax.broadcasted_iota(jnp.int32, (THW, 1), 0)
    if (W & (W - 1)) == 0:
        col = jnp.bitwise_and(idx, W - 1)
    else:
        col = lax.rem(idx, W)
    col_ok = col != (W - 1)                                        # n < W-1

    zero = jnp.zeros_like(h1)
    zrow = jnp.zeros((1, Cm), f32)

    x00 = h1                                                       # h1[m,   n  ]
    if TH > 1:
        x10 = jnp.concatenate([h1[W:, :], hh], axis=0)             # h1[m+1, n  ]
    else:
        x10 = hh
    x01 = jnp.where(col_ok,
                    jnp.concatenate([h1[1:, :], zrow], axis=0),
                    zero)                                          # h1[m,   n+1]
    x11 = jnp.where(col_ok,
                    jnp.concatenate([x10[1:, :], zrow], axis=0),
                    zero)                                          # h1[m+1, n+1]

    # Lane-packed transposed-conv operand; each parity dot takes a contiguous
    # lane slice (host-side weight row packing matches this order).
    xp = jnp.concatenate([x01, x00, x10, x11], axis=1).astype(bf16)  # (THW, 4Cm)

    b2 = b2_ref[...]

    def bn2_relu(y):                                               # BN2 folded
        return jnp.maximum(y + b2, 0.0).astype(bf16)

    h_ee = bn2_relu(jnp.dot(xp[:, Cm:2 * Cm], wee_ref[...],
                            preferred_element_type=f32))
    h_eo = bn2_relu(jnp.dot(xp[:, :2 * Cm], weo_ref[...],
                            preferred_element_type=f32))
    h_oe = bn2_relu(jnp.dot(xp[:, Cm:3 * Cm], woe_ref[...],
                            preferred_element_type=f32))
    h_oo = bn2_relu(jnp.dot(xp, woo_ref[...],
                            preferred_element_type=f32))

    # ---- 1x1 conv3 + BN3 + ReLU per parity; parities packed along lanes ----
    w3 = w3_ref[...]
    b3 = b3_ref[...]

    def conv3(h):
        return jnp.maximum(jnp.dot(h, w3, preferred_element_type=f32) + b3, 0.0)

    z3 = jnp.concatenate([conv3(h_ee), conv3(h_eo), conv3(h_oe), conv3(h_oo)],
                         axis=1)                                   # (THW, 4*Cout)

    # ---- residual add + single lane-dense full-slab store ----
    o_ref[0] = z3 + s_ref[0]


# ----------------------------------------------------------------------------
# Wrapper: parameter folding, layout plumbing, pallas_call.
# ----------------------------------------------------------------------------
def _bn_fold(gamma, beta, mean, var, eps=1e-5):
    scale = gamma / jnp.sqrt(var + eps)
    shift = beta - mean * scale
    return scale, shift


def _pick_row_tile(H, W, Cin, Cm, Cout, budget_bytes=6 * 1024 * 1024):
    """Largest divisor of H whose per-step working set fits a VMEM budget."""
    per_row = 4 * W * (2 * Cin + 16 * Cout + 16 * Cm) + 64
    th = max(1, min(H, budget_bytes // max(per_row, 1)))
    while H % th:
        th -= 1
    return th


def dlink_up_block(b, s, p, row_tile=None):
    """b: (N, Cin, H, W), s: (N, Cout, 2H, 2W), NCHW float32."""
    N, Cin, H, W = b.shape
    Cout = s.shape[1]
    Cm = Cin // 4
    HW = H * W
    assert W % 8 == 0, "tiled kernel assumes W is a multiple of 8"

    TH = _pick_row_tile(H, W, Cin, Cm, Cout) if row_tile is None else row_tile
    assert H % TH == 0, "row_tile must divide H"
    THW = TH * W

    # Fold eval-mode BatchNorm into the adjacent convolutions (fold in f32,
    # cast weights to bf16 afterwards; biases stay f32).
    s1, t1 = _bn_fold(p['bn1_g'], p['bn1_b'], p['bn1_m'], p['bn1_v'])
    s2, t2 = _bn_fold(p['bn2_g'], p['bn2_b'], p['bn2_m'], p['bn2_v'])
    s3, t3 = _bn_fold(p['bn3_g'], p['bn3_b'], p['bn3_m'], p['bn3_v'])

    w1 = (p['conv1_w'][:, :, 0, 0] * s1[:, None]).T                 # (Cin, Cm)
    b1 = (s1 * p['conv1_b'] + t1).reshape(1, Cm)

    wt = p['convt_w'] * s2[None, :, None, None]                     # (Cm_in, Cm_out, 3, 3)
    tap = lambda kh, kw: wt[:, :, kh, kw]                           # (Cm_in, Cm_out)
    # K-packed transposed-conv weights; row order matches the in-kernel
    # lane order of xp = [x01 | x00 | x10 | x11].
    w_ee = tap(1, 1)                                                # x00
    w_eo = jnp.concatenate([tap(1, 0), tap(1, 2)], axis=0)          # [x01 | x00]
    w_oe = jnp.concatenate([tap(2, 1), tap(0, 1)], axis=0)          # [x00 | x10]
    w_oo = jnp.concatenate([tap(2, 0), tap(2, 2),
                            tap(0, 2), tap(0, 0)], axis=0)          # [x01|x00|x10|x11]
    b2 = (s2 * p['convt_b'] + t2).reshape(1, Cm)

    w3 = (p['conv3_w'][:, :, 0, 0] * s3[:, None]).T                 # (Cm, Cout)
    b3 = (s3 * p['conv3_b'] + t3).reshape(1, Cout)

    bf16 = jnp.bfloat16
    w1, w_ee, w_eo, w_oe, w_oo, w3 = (a.astype(bf16)
                                      for a in (w1, w_ee, w_eo, w_oe, w_oo, w3))

    # NCHW -> channels-last flattened spatial.
    b_flat = jnp.transpose(b, (0, 2, 3, 1)).reshape(N, HW, Cin)
    # Skip connection in the kernel's lane-packed layout:
    # s_flat[n, m*W + w, (ph*2+pw)*Cout + c] = s[n, c, 2m+ph, 2w+pw]
    s_flat = (s.reshape(N, Cout, H, 2, W, 2)
               .transpose(0, 2, 4, 3, 5, 1)
               .reshape(N, HW, 4 * Cout))

    kernel = functools.partial(_dlink_up_kernel, TH, W, Cm, Cout)
    n_tiles = H // TH

    out_flat = pl.pallas_call(
        kernel,
        out_shape=jax.ShapeDtypeStruct((N, HW, 4 * Cout), jnp.float32),
        grid_spec=pltpu.PrefetchScalarGridSpec(
            num_scalar_prefetch=0,
            grid=(N, n_tiles),
            in_specs=[
                # main TH-row tile of b
                pl.BlockSpec((1, THW, Cin), lambda n, i: (n, i, 0)),
                # 1-row halo: first image row of the next tile (clamped on the
                # last tile; its value is zeroed in-kernel there)
                pl.BlockSpec((1, W, Cin),
                             lambda n, i: (n, jnp.minimum((i + 1) * TH, H - 1), 0)),
                # skip connection tile (lane-packed parities)
                pl.BlockSpec((1, THW, 4 * Cout), lambda n, i: (n, i, 0)),
                # folded weights / biases (resident)
                pl.BlockSpec((Cin, Cm), lambda n, i: (0, 0)),
                pl.BlockSpec((1, Cm), lambda n, i: (0, 0)),
                pl.BlockSpec((Cm, Cm), lambda n, i: (0, 0)),
                pl.BlockSpec((2 * Cm, Cm), lambda n, i: (0, 0)),
                pl.BlockSpec((2 * Cm, Cm), lambda n, i: (0, 0)),
                pl.BlockSpec((4 * Cm, Cm), lambda n, i: (0, 0)),
                pl.BlockSpec((1, Cm), lambda n, i: (0, 0)),
                pl.BlockSpec((Cm, Cout), lambda n, i: (0, 0)),
                pl.BlockSpec((1, Cout), lambda n, i: (0, 0)),
            ],
            out_specs=pl.BlockSpec((1, THW, 4 * Cout), lambda n, i: (n, i, 0)),
        ),
        compiler_params=pltpu.CompilerParams(
            dimension_semantics=("parallel", "parallel"),
            vmem_limit_bytes=48 * 1024 * 1024,
        ),
    )(b_flat, b_flat, s_flat,
      w1, b1, w_ee, w_eo, w_oe, w_oo, b2, w3, b3)

    # lane-packed (N, HW, 4*Cout) -> NCHW (N, Cout, 2H, 2W)
    out = (out_flat.reshape(N, H, W, 2, 2, Cout)
                   .transpose(0, 5, 1, 3, 2, 4)
                   .reshape(N, Cout, 2 * H, 2 * W))
    return out


# ----------------------------------------------------------------------------
# Pure-JAX reference (eval-mode BN), for validation.
# ----------------------------------------------------------------------------
def reference(b, s, p, eps=1e-5):
    DN = ('NCHW', 'OIHW', 'NCHW')
    PR = lax.Precision.HIGHEST

    def bn(x, g, bb, m, v):
        sc = (g / jnp.sqrt(v + eps))[None, :, None, None]
        return (x - m[None, :, None, None]) * sc + bb[None, :, None, None]

    x = lax.conv_general_dilated(b, p['conv1_w'], (1, 1), 'VALID',
                                 dimension_numbers=DN, precision=PR)
    x = x + p['conv1_b'][None, :, None, None]
    x = jnp.maximum(bn(x, p['bn1_g'], p['bn1_b'], p['bn1_m'], p['bn1_v']), 0.0)

    # ConvTranspose2d(k=3, stride=2, pad=1, out_pad=1) via lhs-dilated conv
    wt_flip = jnp.transpose(jnp.flip(p['convt_w'], axis=(2, 3)), (1, 0, 2, 3))
    x = lax.conv_general_dilated(x, wt_flip, (1, 1), [(1, 2), (1, 2)],
                                 lhs_dilation=(2, 2), dimension_numbers=DN,
                                 precision=PR)
    x = x + p['convt_b'][None, :, None, None]
    x = jnp.maximum(bn(x, p['bn2_g'], p['bn2_b'], p['bn2_m'], p['bn2_v']), 0.0)

    x = lax.conv_general_dilated(x, p['conv3_w'], (1, 1), 'VALID',
                                 dimension_numbers=DN, precision=PR)
    x = x + p['conv3_b'][None, :, None, None]
    x = jnp.maximum(bn(x, p['bn3_g'], p['bn3_b'], p['bn3_m'], p['bn3_v']), 0.0)
    return x + s


def init_params(key, Cin, Cout):
    Cm = Cin // 4
    ks = jax.random.split(key, 18)

    def nrm(k, shape, scale=0.1):
        return scale * jax.random.normal(k, shape, jnp.float32)

    return {
        'conv1_w': nrm(ks[0], (Cm, Cin, 1, 1)),
        'conv1_b': nrm(ks[1], (Cm,)),
        'bn1_g': 1.0 + nrm(ks[2], (Cm,)),
        'bn1_b': nrm(ks[3], (Cm,)),
        'bn1_m': nrm(ks[4], (Cm,)),
        'bn1_v': 1.0 + 0.5 * jax.random.uniform(ks[5], (Cm,), jnp.float32),
        'convt_w': nrm(ks[6], (Cm, Cm, 3, 3)),
        'convt_b': nrm(ks[7], (Cm,)),
        'bn2_g': 1.0 + nrm(ks[8], (Cm,)),
        'bn2_b': nrm(ks[9], (Cm,)),
        'bn2_m': nrm(ks[10], (Cm,)),
        'bn2_v': 1.0 + 0.5 * jax.random.uniform(ks[11], (Cm,), jnp.float32),
        'conv3_w': nrm(ks[12], (Cout, Cm, 1, 1)),
        'conv3_b': nrm(ks[13], (Cout,)),
        'bn3_g': 1.0 + nrm(ks[14], (Cout,)),
        'bn3_b': nrm(ks[15], (Cout,)),
        'bn3_m': nrm(ks[16], (Cout,)),
        'bn3_v': 1.0 + 0.5 * jax.random.uniform(ks[17], (Cout,), jnp.float32),
    }


if __name__ == "__main__":
    N, Cin, Cout, H, W = 2, 16, 8, 16, 16

    key = jax.random.PRNGKey(0)
    k_b, k_s, k_p = jax.random.split(key, 3)
    b = jax.random.normal(k_b, (N, Cin, H, W), jnp.float32)
    s = jax.random.normal(k_s, (N, Cout, 2 * H, 2 * W), jnp.float32)
    params = init_params(k_p, Cin, Cout)

    # row_tile=8 -> 2 row-tiles per image: exercises both the real-halo and
    # the zero-halo (last tile) paths.
    out = dlink_up_block(b, s, params, row_tile=8)
    out = jax.block_until_ready(out)

    ref = jax.block_until_ready(reference(b, s, params))
    # bf16 MXU operands with f32 accumulation -> slightly looser tolerance.
    np.testing.assert_allclose(np.asarray(out), np.asarray(ref),
                               rtol=2e-2, atol=2e-2)
    print("KERNEL_OK")
</pallas_src>

<mosaic_0001>
module attributes {stable_mosaic.version = 11 : i64} {
  func.func @_dlink_up_kernel(%arg0: i32, %arg1: i32, %arg2: memref<1x128x16xf32, #tpu.memory_space<vmem>>, %arg3: memref<1x16x16xf32, #tpu.memory_space<vmem>>, %arg4: memref<1x128x32xf32, #tpu.memory_space<vmem>>, %arg5: memref<16x4xbf16, #tpu.memory_space<vmem>>, %arg6: memref<1x4xf32, #tpu.memory_space<vmem>>, %arg7: memref<4x4xbf16, #tpu.memory_space<vmem>>, %arg8: memref<8x4xbf16, #tpu.memory_space<vmem>>, %arg9: memref<8x4xbf16, #tpu.memory_space<vmem>>, %arg10: memref<16x4xbf16, #tpu.memory_space<vmem>>, %arg11: memref<1x4xf32, #tpu.memory_space<vmem>>, %arg12: memref<4x8xbf16, #tpu.memory_space<vmem>>, %arg13: memref<1x8xf32, #tpu.memory_space<vmem>>, %arg14: memref<1x128x32xf32, #tpu.memory_space<vmem>>) attributes {dimension_semantics = [#tpu.dimension_semantics<parallel>, #tpu.dimension_semantics<parallel>], iteration_bounds = array<i64: 2, 2>, scalar_prefetch = 0 : i64, scratch_operands = 0 : i64, tpu.core_type = #tpu.core_type<tc>, window_params = [{transform_indices = @transform_0, window_bounds = array<i64: 1, 128, 16>}, {transform_indices = @transform_1, window_bounds = array<i64: 1, 16, 16>}, {transform_indices = @transform_2, window_bounds = array<i64: 1, 128, 32>}, {pipeline_mode = #tpu.pipeline_mode<synchronous>, transform_indices = @transform_3, window_bounds = array<i64: 16, 4>}, {pipeline_mode = #tpu.pipeline_mode<synchronous>, transform_indices = @transform_4, window_bounds = array<i64: 1, 4>}, {pipeline_mode = #tpu.pipeline_mode<synchronous>, transform_indices = @transform_5, window_bounds = array<i64: 4, 4>}, {pipeline_mode = #tpu.pipeline_mode<synchronous>, transform_indices = @transform_6, window_bounds = array<i64: 8, 4>}, {pipeline_mode = #tpu.pipeline_mode<synchronous>, transform_indices = @transform_7, window_bounds = array<i64: 8, 4>}, {pipeline_mode = #tpu.pipeline_mode<synchronous>, transform_indices = @transform_8, window_bounds = array<i64: 16, 4>}, {pipeline_mode = #tpu.pipeline_mode<synchronous>, transform_indices = @transform_9, window_bounds = array<i64: 1, 4>}, {pipeline_mode = #tpu.pipeline_mode<synchronous>, transform_indices = @transform_10, window_bounds = array<i64: 4, 8>}, {pipeline_mode = #tpu.pipeline_mode<synchronous>, transform_indices = @transform_11, window_bounds = array<i64: 1, 8>}, {transform_indices = @transform_12, window_bounds = array<i64: 1, 128, 32>}]} {
    %c0 = arith.constant 0 : index
    %c0_0 = arith.constant 0 : index
    %c0_1 = arith.constant 0 : index
    %0 = vector.load %arg2[%c0, %c0_0, %c0_1] : memref<1x128x16xf32, #tpu.memory_space<vmem>>, vector<1x128x16xf32>
    %1 = vector.shape_cast %0 : vector<1x128x16xf32> to vector<128x16xf32>
    %2 = arith.truncf %1 : vector<128x16xf32> to vector<128x16xbf16>
    %c0_2 = arith.constant 0 : index
    %c0_3 = arith.constant 0 : index
    %3 = vector.load %arg5[%c0_2, %c0_3] : memref<16x4xbf16, #tpu.memory_space<vmem>>, vector<16x4xbf16>
    %cst = arith.constant dense<0.000000e+00> : vector<128x4xf32>
    %4 = tpu.matmul %2, %3, %cst {dimension_numbers = #tpu.dot_dimension_numbers<[1], [0], [0], [1], [0, 0, 1, 1], [], []>} : vector<128x16xbf16>, vector<16x4xbf16>, vector<128x4xf32> -> vector<128x4xf32>
    %c0_4 = arith.constant 0 : index
    %c0_5 = arith.constant 0 : index
    %5 = vector.load %arg6[%c0_4, %c0_5] : memref<1x4xf32, #tpu.memory_space<vmem>>, vector<1x4xf32>
    %6 = vector.broadcast %5 : vector<1x4xf32> to vector<128x4xf32>
    %7 = arith.addf %4, %6 : vector<128x4xf32>
    %cst_6 = arith.constant 0.000000e+00 : f32
    %8 = vector.broadcast %cst_6 : f32 to vector<128x4xf32>
    %9 = arith.maximumf %7, %8 : vector<128x4xf32>
    %c0_7 = arith.constant 0 : index
    %c0_8 = arith.constant 0 : index
    %c0_9 = arith.constant 0 : index
    %10 = vector.load %arg3[%c0_7, %c0_8, %c0_9] : memref<1x16x16xf32, #tpu.memory_space<vmem>>, vector<1x16x16xf32>
    %11 = vector.shape_cast %10 : vector<1x16x16xf32> to vector<16x16xf32>
    %12 = arith.truncf %11 : vector<16x16xf32> to vector<16x16xbf16>
    %c0_10 = arith.constant 0 : index
    %c0_11 = arith.constant 0 : index
    %13 = vector.load %arg5[%c0_10, %c0_11] : memref<16x4xbf16, #tpu.memory_space<vmem>>, vector<16x4xbf16>
    %cst_12 = arith.constant dense<0.000000e+00> : vector<16x4xf32>
    %14 = tpu.matmul %12, %13, %cst_12 {dimension_numbers = #tpu.dot_dimension_numbers<[1], [0], [0], [1], [0, 0, 1, 1], [], []>} : vector<16x16xbf16>, vector<16x4xbf16>, vector<16x4xf32> -> vector<16x4xf32>
    %c0_13 = arith.constant 0 : index
    %c0_14 = arith.constant 0 : index
    %15 = vector.load %arg6[%c0_13, %c0_14] : memref<1x4xf32, #tpu.memory_space<vmem>>, vector<1x4xf32>
    %16 = vector.broadcast %15 : vector<1x4xf32> to vector<16x4xf32>
    %17 = arith.addf %14, %16 : vector<16x4xf32>
    %cst_15 = arith.constant 0.000000e+00 : f32
    %18 = vector.broadcast %cst_15 : f32 to vector<16x4xf32>
    %19 = arith.maximumf %17, %18 : vector<16x4xf32>
    %c1_i32 = arith.constant 1 : i32
    %20 = arith.cmpi eq, %arg1, %c1_i32 : i32
    %21 = arith.extui %20 : i1 to i32
    %22 = arith.sitofp %21 : i32 to f32
    %cst_16 = arith.constant 1.000000e+00 : f32
    %23 = arith.subf %cst_16, %22 : f32
    %24 = vector.broadcast %23 : f32 to vector<16x4xf32>
    %25 = arith.mulf %19, %24 : vector<16x4xf32>
    %26 = tpu.iota {dimensions = array<i32: 0>} : vector<128x1xi32>
    %c15_i32 = arith.constant 15 : i32
    %27 = vector.broadcast %c15_i32 : i32 to vector<128x1xi32>
    %28 = arith.andi %26, %27 : vector<128x1xi32>
    %c15_i32_17 = arith.constant 15 : i32
    %29 = vector.broadcast %c15_i32_17 : i32 to vector<128x1xi32>
    %30 = arith.cmpi ne, %28, %29 : vector<128x1xi32>
    %cst_18 = arith.constant 0.000000e+00 : f32
    %31 = vector.broadcast %cst_18 : f32 to vector<128x4xf32>
    %cst_19 = arith.constant 0.000000e+00 : f32
    %32 = vector.broadcast %cst_19 : f32 to vector<1x4xf32>
    %33 = vector.extract_strided_slice %9 {offsets = [16, 0], sizes = [112, 4], strides = [1, 1]} : vector<128x4xf32> to vector<112x4xf32>
    %34 = tpu.concatenate %33, %25 in 0 : vector<112x4xf32>, vector<16x4xf32> -> vector<128x4xf32>
    %35 = vector.extract_strided_slice %9 {offsets = [1, 0], sizes = [127, 4], strides = [1, 1]} : vector<128x4xf32> to vector<127x4xf32>
    %36 = tpu.concatenate %35, %32 in 0 : vector<127x4xf32>, vector<1x4xf32> -> vector<128x4xf32>
    %37 = vector.shape_cast %30 : vector<128x1xi1> to vector<128x1xi1>
    %38 = vector.broadcast %37 : vector<128x1xi1> to vector<128x4xi1>
    %39 = arith.select %38, %36, %31 : vector<128x4xi1>, vector<128x4xf32>
    %40 = vector.extract_strided_slice %34 {offsets = [1, 0], sizes = [127, 4], strides = [1, 1]} : vector<128x4xf32> to vector<127x4xf32>
    %41 = tpu.concatenate %40, %32 in 0 : vector<127x4xf32>, vector<1x4xf32> -> vector<128x4xf32>
    %42 = vector.shape_cast %30 : vector<128x1xi1> to vector<128x1xi1>
    %43 = vector.broadcast %42 : vector<128x1xi1> to vector<128x4xi1>
    %44 = arith.select %43, %41, %31 : vector<128x4xi1>, vector<128x4xf32>
    %45 = tpu.concatenate %39, %9, %34, %44 in 1 : vector<128x4xf32>, vector<128x4xf32>, vector<128x4xf32>, vector<128x4xf32> -> vector<128x16xf32>
    %46 = arith.truncf %45 : vector<128x16xf32> to vector<128x16xbf16>
    %c0_20 = arith.constant 0 : index
    %c0_21 = arith.constant 0 : index
    %47 = vector.load %arg11[%c0_20, %c0_21] : memref<1x4xf32, #tpu.memory_space<vmem>>, vector<1x4xf32>
    %48 = vector.extract_strided_slice %46 {offsets = [0, 4], sizes = [128, 4], strides = [1, 1]} : vector<128x16xbf16> to vector<128x4xbf16>
    %c0_22 = arith.constant 0 : index
    %c0_23 = arith.constant 0 : index
    %49 = vector.load %arg7[%c0_22, %c0_23] : memref<4x4xbf16, #tpu.memory_space<vmem>>, vector<4x4xbf16>
    %cst_24 = arith.constant dense<0.000000e+00> : vector<128x4xf32>
    %50 = tpu.matmul %48, %49, %cst_24 {dimension_numbers = #tpu.dot_dimension_numbers<[1], [0], [0], [1], [0, 0, 1, 1], [], []>} : vector<128x4xbf16>, vector<4x4xbf16>, vector<128x4xf32> -> vector<128x4xf32>
    %51 = vector.broadcast %47 : vector<1x4xf32> to vector<128x4xf32>
    %52 = arith.addf %50, %51 : vector<128x4xf32>
    %cst_25 = arith.constant 0.000000e+00 : f32
    %53 = vector.broadcast %cst_25 : f32 to vector<128x4xf32>
    %54 = arith.maximumf %52, %53 : vector<128x4xf32>
    %55 = arith.truncf %54 : vector<128x4xf32> to vector<128x4xbf16>
    %56 = vector.extract_strided_slice %46 {offsets = [0, 0], sizes = [128, 8], strides = [1, 1]} : vector<128x16xbf16> to vector<128x8xbf16>
    %c0_26 = arith.constant 0 : index
    %c0_27 = arith.constant 0 : index
    %57 = vector.load %arg8[%c0_26, %c0_27] : memref<8x4xbf16, #tpu.memory_space<vmem>>, vector<8x4xbf16>
    %cst_28 = arith.constant dense<0.000000e+00> : vector<128x4xf32>
    %58 = tpu.matmul %56, %57, %cst_28 {dimension_numbers = #tpu.dot_dimension_numbers<[1], [0], [0], [1], [0, 0, 1, 1], [], []>} : vector<128x8xbf16>, vector<8x4xbf16>, vector<128x4xf32> -> vector<128x4xf32>
    %59 = vector.broadcast %47 : vector<1x4xf32> to vector<128x4xf32>
    %60 = arith.addf %58, %59 : vector<128x4xf32>
    %cst_29 = arith.constant 0.000000e+00 : f32
    %61 = vector.broadcast %cst_29 : f32 to vector<128x4xf32>
    %62 = arith.maximumf %60, %61 : vector<128x4xf32>
    %63 = arith.truncf %62 : vector<128x4xf32> to vector<128x4xbf16>
    %64 = vector.extract_strided_slice %46 {offsets = [0, 4], sizes = [128, 8], strides = [1, 1]} : vector<128x16xbf16> to vector<128x8xbf16>
    %c0_30 = arith.constant 0 : index
    %c0_31 = arith.constant 0 : index
    %65 = vector.load %arg9[%c0_30, %c0_31] : memref<8x4xbf16, #tpu.memory_space<vmem>>, vector<8x4xbf16>
    %cst_32 = arith.constant dense<0.000000e+00> : vector<128x4xf32>
    %66 = tpu.matmul %64, %65, %cst_32 {dimension_numbers = #tpu.dot_dimension_numbers<[1], [0], [0], [1], [0, 0, 1, 1], [], []>} : vector<128x8xbf16>, vector<8x4xbf16>, vector<128x4xf32> -> vector<128x4xf32>
    %67 = vector.broadcast %47 : vector<1x4xf32> to vector<128x4xf32>
    %68 = arith.addf %66, %67 : vector<128x4xf32>
    %cst_33 = arith.constant 0.000000e+00 : f32
    %69 = vector.broadcast %cst_33 : f32 to vector<128x4xf32>
    %70 = arith.maximumf %68, %69 : vector<128x4xf32>
    %71 = arith.truncf %70 : vector<128x4xf32> to vector<128x4xbf16>
    %c0_34 = arith.constant 0 : index
    %c0_35 = arith.constant 0 : index
    %72 = vector.load %arg10[%c0_34, %c0_35] : memref<16x4xbf16, #tpu.memory_space<vmem>>, vector<16x4xbf16>
    %cst_36 = arith.constant dense<0.000000e+00> : vector<128x4xf32>
    %73 = tpu.matmul %46, %72, %cst_36 {dimension_numbers = #tpu.dot_dimension_numbers<[1], [0], [0], [1], [0, 0, 1, 1], [], []>} : vector<128x16xbf16>, vector<16x4xbf16>, vector<128x4xf32> -> vector<128x4xf32>
    %74 = vector.broadcast %47 : vector<1x4xf32> to vector<128x4xf32>
    %75 = arith.addf %73, %74 : vector<128x4xf32>
    %cst_37 = arith.constant 0.000000e+00 : f32
    %76 = vector.broadcast %cst_37 : f32 to vector<128x4xf32>
    %77 = arith.maximumf %75, %76 : vector<128x4xf32>
    %78 = arith.truncf %77 : vector<128x4xf32> to vector<128x4xbf16>
    %c0_38 = arith.constant 0 : index
    %c0_39 = arith.constant 0 : index
    %79 = vector.load %arg12[%c0_38, %c0_39] : memref<4x8xbf16, #tpu.memory_space<vmem>>, vector<4x8xbf16>
    %c0_40 = arith.constant 0 : index
    %c0_41 = arith.constant 0 : index
    %80 = vector.load %arg13[%c0_40, %c0_41] : memref<1x8xf32, #tpu.memory_space<vmem>>, vector<1x8xf32>
    %cst_42 = arith.constant dense<0.000000e+00> : vector<128x8xf32>
    %81 = tpu.matmul %55, %79, %cst_42 {dimension_numbers = #tpu.dot_dimension_numbers<[1], [0], [0], [1], [0, 0, 1, 1], [], []>} : vector<128x4xbf16>, vector<4x8xbf16>, vector<128x8xf32> -> vector<128x8xf32>
    %82 = vector.broadcast %80 : vector<1x8xf32> to vector<128x8xf32>
    %83 = arith.addf %81, %82 : vector<128x8xf32>
    %cst_43 = arith.constant 0.000000e+00 : f32
    %84 = vector.broadcast %cst_43 : f32 to vector<128x8xf32>
    %85 = arith.maximumf %83, %84 : vector<128x8xf32>
    %cst_44 = arith.constant dense<0.000000e+00> : vector<128x8xf32>
    %86 = tpu.matmul %63, %79, %cst_44 {dimension_numbers = #tpu.dot_dimension_numbers<[1], [0], [0], [1], [0, 0, 1, 1], [], []>} : vector<128x4xbf16>, vector<4x8xbf16>, vector<128x8xf32> -> vector<128x8xf32>
    %87 = vector.broadcast %80 : vector<1x8xf32> to vector<128x8xf32>
    %88 = arith.addf %86, %87 : vector<128x8xf32>
    %cst_45 = arith.constant 0.000000e+00 : f32
    %89 = vector.broadcast %cst_45 : f32 to vector<128x8xf32>
    %90 = arith.maximumf %88, %89 : vector<128x8xf32>
    %cst_46 = arith.constant dense<0.000000e+00> : vector<128x8xf32>
    %91 = tpu.matmul %71, %79, %cst_46 {dimension_numbers = #tpu.dot_dimension_numbers<[1], [0], [0], [1], [0, 0, 1, 1], [], []>} : vector<128x4xbf16>, vector<4x8xbf16>, vector<128x8xf32> -> vector<128x8xf32>
    %92 = vector.broadcast %80 : vector<1x8xf32> to vector<128x8xf32>
    %93 = arith.addf %91, %92 : vector<128x8xf32>
    %cst_47 = arith.constant 0.000000e+00 : f32
    %94 = vector.broadcast %cst_47 : f32 to vector<128x8xf32>
    %95 = arith.maximumf %93, %94 : vector<128x8xf32>
    %cst_48 = arith.constant dense<0.000000e+00> : vector<128x8xf32>
    %96 = tpu.matmul %78, %79, %cst_48 {dimension_numbers = #tpu.dot_dimension_numbers<[1], [0], [0], [1], [0, 0, 1, 1], [], []>} : vector<128x4xbf16>, vector<4x8xbf16>, vector<128x8xf32> -> vector<128x8xf32>
    %97 = vector.broadcast %80 : vector<1x8xf32> to vector<128x8xf32>
    %98 = arith.addf %96, %97 : vector<128x8xf32>
    %cst_49 = arith.constant 0.000000e+00 : f32
    %99 = vector.broadcast %cst_49 : f32 to vector<128x8xf32>
    %100 = arith.maximumf %98, %99 : vector<128x8xf32>
    %101 = tpu.concatenate %85, %90, %95, %100 in 1 : vector<128x8xf32>, vector<128x8xf32>, vector<128x8xf32>, vector<128x8xf32> -> vector<128x32xf32>
    %c0_50 = arith.constant 0 : index
    %c0_51 = arith.constant 0 : index
    %c0_52 = arith.constant 0 : index
    %102 = vector.load %arg4[%c0_50, %c0_51, %c0_52] : memref<1x128x32xf32, #tpu.memory_space<vmem>>, vector<1x128x32xf32>
    %103 = vector.shape_cast %102 : vector<1x128x32xf32> to vector<128x32xf32>
    %104 = arith.addf %101, %103 : vector<128x32xf32>
    %c0_53 = arith.constant 0 : index
    %c0_54 = arith.constant 0 : index
    %c0_55 = arith.constant 0 : index
    %105 = vector.load %arg14[%c0_53, %c0_54, %c0_55] : memref<1x128x32xf32, #tpu.memory_space<vmem>>, vector<1x128x32xf32>
    %106 = vector.shape_cast %105 : vector<1x128x32xf32> to vector<128x32xf32>
    %107 = vector.shape_cast %104 : vector<128x32xf32> to vector<1x128x32xf32>
    tpu.vector_store %arg14[%c0_53, %c0_54, %c0_55], %107 {strides = array<i32>} : memref<1x128x32xf32, #tpu.memory_space<vmem>>, vector<1x128x32xf32>,
    return
  }
  func.func @transform_0(%arg0: i32, %arg1: i32) -> (i32, i32, i32) {
    %c0_i32 = arith.constant 0 : i32
    %c0_i32_0 = arith.constant 0 : i32
    return %arg0, %arg1, %c0_i32 : i32, i32, i32
  }
  func.func @transform_1(%arg0: i32, %arg1: i32) -> (i32, i32, i32) {
    %c1_i32 = arith.constant 1 : i32
    %0 = arith.addi %arg1, %c1_i32 : i32
    %c8_i32 = arith.constant 8 : i32
    %1 = arith.muli %0, %c8_i32 : i32
    %c15_i32 = arith.constant 15 : i32
    %2 = arith.minsi %1, %c15_i32 : i32
    %c0_i32 = arith.constant 0 : i32
    %c0_i32_0 = arith.constant 0 : i32
    return %arg0, %2, %c0_i32 : i32, i32, i32
  }
  func.func @transform_2(%arg0: i32, %arg1: i32) -> (i32, i32, i32) {
    %c0_i32 = arith.constant 0 : i32
    %c0_i32_0 = arith.constant 0 : i32
    return %arg0, %arg1, %c0_i32 : i32, i32, i32
  }
  func.func @transform_3(%arg0: i32, %arg1: i32) -> (i32, i32) {
    %c0_i32 = arith.constant 0 : i32
    %c0_i32_0 = arith.constant 0 : i32
    %c0_i32_1 = arith.constant 0 : i32
    return %c0_i32, %c0_i32_0 : i32, i32
  }
  func.func @transform_4(%arg0: i32, %arg1: i32) -> (i32, i32) {
    %c0_i32 = arith.constant 0 : i32
    %c0_i32_0 = arith.constant 0 : i32
    %c0_i32_1 = arith.constant 0 : i32
    return %c0_i32, %c0_i32_0 : i32, i32
  }
  func.func @transform_5(%arg0: i32, %arg1: i32) -> (i32, i32) {
    %c0_i32 = arith.constant 0 : i32
    %c0_i32_0 = arith.constant 0 : i32
    %c0_i32_1 = arith.constant 0 : i32
    return %c0_i32, %c0_i32_0 : i32, i32
  }
  func.func @transform_6(%arg0: i32, %arg1: i32) -> (i32, i32) {
    %c0_i32 = arith.constant 0 : i32
    %c0_i32_0 = arith.constant 0 : i32
    %c0_i32_1 = arith.constant 0 : i32
    return %c0_i32, %c0_i32_0 : i32, i32
  }
  func.func @transform_7(%arg0: i32, %arg1: i32) -> (i32, i32) {
    %c0_i32 = arith.constant 0 : i32
    %c0_i32_0 = arith.constant 0 : i32
    %c0_i32_1 = arith.constant 0 : i32
    return %c0_i32, %c0_i32_0 : i32, i32
  }
  func.func @transform_8(%arg0: i32, %arg1: i32) -> (i32, i32) {
    %c0_i32 = arith.constant 0 : i32
    %c0_i32_0 = arith.constant 0 : i32
    %c0_i32_1 = arith.constant 0 : i32
    return %c0_i32, %c0_i32_0 : i32, i32
  }
  func.func @transform_9(%arg0: i32, %arg1: i32) -> (i32, i32) {
    %c0_i32 = arith.constant 0 : i32
    %c0_i32_0 = arith.constant 0 : i32
    %c0_i32_1 = arith.constant 0 : i32
    return %c0_i32, %c0_i32_0 : i32, i32
  }
  func.func @transform_10(%arg0: i32, %arg1: i32) -> (i32, i32) {
    %c0_i32 = arith.constant 0 : i32
    %c0_i32_0 = arith.constant 0 : i32
    %c0_i32_1 = arith.constant 0 : i32
    return %c0_i32, %c0_i32_0 : i32, i32
  }
  func.func @transform_11(%arg0: i32, %arg1: i32) -> (i32, i32) {
    %c0_i32 = arith.constant 0 : i32
    %c0_i32_0 = arith.constant 0 : i32
    %c0_i32_1 = arith.constant 0 : i32
    return %c0_i32, %c0_i32_0 : i32, i32
  }
  func.func @transform_12(%arg0: i32, %arg1: i32) -> (i32, i32, i32) {
    %c0_i32 = arith.constant 0 : i32
    %c0_i32_0 = arith.constant 0 : i32
    return %arg0, %arg1, %c0_i32 : i32, i32, i32
  }
}

</mosaic_0001>

<llo_original>
// kernel: tpu_custom_call.1
$region0: #{tpu_custom_call.1}
  #allocation0 [shape = 'u32[]', space=smem, size = 0x4, offset = 0x4, fixed_abs, tag = 'smem constant byte address 0x4 - core index']
  #allocation1 [shape = 'u32[144,128]{1,0:T(1,128)}', space=vmem, size = 0x12000, scoped, tag = 'internal scratch']
  %s0 = inlined_call_operand.vmem [shape: f32[2,256,16], index: 0, kind: input, shape index: {}]
  %s1 = inlined_call_operand.vmem [shape: f32[2,256,16], index: 1, kind: input, shape index: {}]
  %s2 = inlined_call_operand.vmem [shape: f32[2,256,32], index: 2, kind: input, shape index: {}]
  %s3 = inlined_call_operand.vmem [shape: bf16[16,4], index: 3, kind: input, shape index: {}]
  %s4 = inlined_call_operand.vmem [shape: f32[1,4], index: 4, kind: input, shape index: {}]
  %s5 = inlined_call_operand.vmem [shape: bf16[4,4], index: 5, kind: input, shape index: {}]
  %s6 = inlined_call_operand.vmem [shape: bf16[8,4], index: 6, kind: input, shape index: {}]
  %s7 = inlined_call_operand.vmem [shape: bf16[8,4], index: 7, kind: input, shape index: {}]
  %s8 = inlined_call_operand.vmem [shape: bf16[16,4], index: 8, kind: input, shape index: {}]
  %s9 = inlined_call_operand.vmem [shape: f32[1,4], index: 9, kind: input, shape index: {}]
  %s10 = inlined_call_operand.vmem [shape: bf16[4,8], index: 10, kind: input, shape index: {}]
  %s11 = inlined_call_operand.vmem [shape: f32[1,8], index: 11, kind: input, shape index: {}]
  %s12 = inlined_call_operand.vmem [shape: f32[2,256,32], index: 12, kind: output, shape index: {}]
  %s13 = sld [smem:[#allocation0]]
  $region81: #{tpu_custom_call.1} parent=0
    _
  %s15 = ssub.s32 1, %s13
  %s16 = scalar_select 0, %s15, %s13
  loop: start=0, step=1, limit=6
  $region2: #{tpu_custom_call.1} parent=0 // loop_pre_header
    _
  $region3: #{tpu_custom_call.1} parent=0 // loop_header
    %s18 = sphi 0, %s22
    %p19 = scmp.ge.s32.totalorder %s18, 6
    %s25 = sphi 0, %s37
    %s26 = sphi 0, %s33
    %s27 = sphi 0, %s25
    %s28 = sphi 0, %s26
    %s29 = sphi 0, %s27
    %s30 = sphi 0, %s28
    %s42 = sphi 0, %s44
    %s45 = sphi 0, %s42
    %s46 = sphi 0, %s45
    %s62 = sphi 0, %s46
    %s78 = sphi 0, %s80
    %s81 = sphi 0, %s78
    %s82 = sphi 0, %s81
    %s98 = sphi 0, %s82
    %s106 = sphi 0, %s108
    %s109 = sphi 0, %s106
    %s110 = sphi 0, %s109
    %s126 = sphi 0, %s110
    %s130 = sphi 0, %s130
    %s132 = sphi 0, %s130
    %s133 = sphi 0, %s132
    %s147 = sphi 0, %s133
    %s151 = sphi 0, %s151
    %s153 = sphi 0, %s151
    %s154 = sphi 0, %s153
    %s168 = sphi 0, %s154
    %s172 = sphi 0, %s172
    %s174 = sphi 0, %s172
    %s175 = sphi 0, %s174
    %s189 = sphi 0, %s175
    %s193 = sphi 0, %s193
    %s195 = sphi 0, %s193
    %s196 = sphi 0, %s195
    %s210 = sphi 0, %s196
    %s214 = sphi 0, %s214
    %s216 = sphi 0, %s214
    %s217 = sphi 0, %s216
    %s231 = sphi 0, %s217
    %s235 = sphi 0, %s235
    %s237 = sphi 0, %s235
    %s238 = sphi 0, %s237
    %s252 = sphi 0, %s238
    %s256 = sphi 0, %s256
    %s258 = sphi 0, %s256
    %s259 = sphi 0, %s258
    %s273 = sphi 0, %s259
    %s277 = sphi 0, %s277
    %s279 = sphi 0, %s277
    %s280 = sphi 0, %s279
    %s294 = sphi 0, %s280
    %s298 = sphi 0, %s298
    %s300 = sphi 0, %s298
    %s301 = sphi 0, %s300
    %s315 = sphi 0, %s301
    %s323 = sphi 0, %s325
    %s326 = sphi 0, %s323
    %s327 = sphi 0, %s326
    %s343 = sphi 0, %s327
  $region4: #{tpu_custom_call.1} parent=0 // loop_header_branch
    %21 = sbr.rel (%p19) target = $region8
  $region5: #{tpu_custom_call.1} parent=0 // loop_body
    %s23 = ssub.s32 %s18, 1
    %s24 = ssub.s32 %s18, 2
    %s31 = sadd.s32 1, %s26
    %p32 = scmp.ge.s32.totalorder %s31, 2
    %s33 = scalar_select %p32, 0, %s31
    %s34 = sadd.s32 1, %s25
    %s35 = scalar_select %p32, %s34, %s25
    %p36 = scmp.ge.s32.totalorder %s35, 2
    %s37 = scalar_select %p36, 0, %s35
    %s38 = ssub.s32 %s25, %s37
    %s39 = ssub.s32 %s26, %s33
    %s40 = sor.u32 %s38, %s39
    %p41 = scmp.eq.s32.totalorder %s40, 0
    %s43 = sadd.s32 %s42, 1
    %s44 = scalar_select %p41, %s42, %s43
    %p47 = pneg %p41
    %p48 = scmp.eq.s32.totalorder %s18, 3
    %p49 = por %p47, %p48
    %p50 = scmp.ne.s32.totalorder %s42, %s45
    %p51 = scmp.eq.s32.totalorder %s18, 0
    %p52 = por %p50, %p51
    %p53 = scmp.ne.s32.totalorder %s42, %s45
    %p54 = scmp.eq.s32.totalorder %s23, 3
    %p55 = por %p53, %p54
    %p56 = scmp.ne.s32.totalorder %s45, %s46
    %p57 = scmp.eq.s32.totalorder %s23, 0
    %p58 = por %p56, %p57
    %p59 = scmp.ne.s32.totalorder %s45, %s46
    %p60 = scmp.eq.s32.totalorder %s24, 3
    %p61 = por %p59, %p60
    %p63 = scmp.ne.s32.totalorder %s46, %s62
    %p64 = scmp.eq.s32.totalorder %s24, 0
    %p65 = por %p63, %p64
    %s66 = sadd.s32 %s26, 1
    %s67 = smul.u32 %s66, 8
    %p68 = scmp.lt.s32.totalorder %s67, 15
    %s69 = scalar_select %p68, %s67, 15
    %s70 = sadd.s32 %s33, 1
    %s71 = smul.u32 %s70, 8
    %p72 = scmp.lt.s32.totalorder %s71, 15
    %s73 = scalar_select %p72, %s71, 15
    %s74 = ssub.s32 %s25, %s37
    %s75 = ssub.s32 %s69, %s73
    %s76 = sor.u32 %s74, %s75
    %p77 = scmp.eq.s32.totalorder %s76, 0
    %s79 = sadd.s32 %s78, 1
    %s80 = scalar_select %p77, %s78, %s79
    %p83 = pneg %p77
    %p84 = scmp.eq.s32.totalorder %s18, 3
    %p85 = por %p83, %p84
    %p86 = scmp.ne.s32.totalorder %s78, %s81
    %p87 = scmp.eq.s32.totalorder %s18, 0
    %p88 = por %p86, %p87
    %p89 = scmp.ne.s32.totalorder %s78, %s81
    %p90 = scmp.eq.s32.totalorder %s23, 3
    %p91 = por %p89, %p90
    %p92 = scmp.ne.s32.totalorder %s81, %s82
    %p93 = scmp.eq.s32.totalorder %s23, 0
    %p94 = por %p92, %p93
    %p95 = scmp.ne.s32.totalorder %s81, %s82
    %p96 = scmp.eq.s32.totalorder %s24, 3
    %p97 = por %p95, %p96
    %p99 = scmp.ne.s32.totalorder %s82, %s98
    %p100 = scmp.eq.s32.totalorder %s24, 0
    %p101 = por %p99, %p100
    %s102 = ssub.s32 %s25, %s37
    %s103 = ssub.s32 %s26, %s33
    %s104 = sor.u32 %s102, %s103
    %p105 = scmp.eq.s32.totalorder %s104, 0
    %s107 = sadd.s32 %s106, 1
    %s108 = scalar_select %p105, %s106, %s107
    %p111 = pneg %p105
    %p112 = scmp.eq.s32.totalorder %s18, 3
    %p113 = por %p111, %p112
    %p114 = scmp.ne.s32.totalorder %s106, %s109
    %p115 = scmp.eq.s32.totalorder %s18, 0
    %p116 = por %p114, %p115
    %p117 = scmp.ne.s32.totalorder %s106, %s109
    %p118 = scmp.eq.s32.totalorder %s23, 3
    %p119 = por %p117, %p118
    %p120 = scmp.ne.s32.totalorder %s109, %s110
    %p121 = scmp.eq.s32.totalorder %s23, 0
    %p122 = por %p120, %p121
    %p123 = scmp.ne.s32.totalorder %s109, %s110
    %p124 = scmp.eq.s32.totalorder %s24, 3
    %p125 = por %p123, %p124
    %p127 = scmp.ne.s32.totalorder %s110, %s126
    %p128 = scmp.eq.s32.totalorder %s24, 0
    %p129 = por %p127, %p128
    %s131 = sadd.s32 %s130, 1
    %p134 = scmp.eq.s32.totalorder %s18, 3
    %p135 = scmp.ne.s32.totalorder %s130, %s132
    %p136 = scmp.eq.s32.totalorder %s18, 0
    %p137 = por %p135, %p136
    %p138 = scmp.ne.s32.totalorder %s130, %s132
    %p139 = scmp.eq.s32.totalorder %s23, 3
    %p140 = por %p138, %p139
    %p141 = scmp.ne.s32.totalorder %s132, %s133
    %p142 = scmp.eq.s32.totalorder %s23, 0
    %p143 = por %p141, %p142
    %p144 = scmp.ne.s32.totalorder %s132, %s133
    %p145 = scmp.eq.s32.totalorder %s24, 3
    %p146 = por %p144, %p145
    %p148 = scmp.ne.s32.totalorder %s133, %s147
    %p149 = scmp.eq.s32.totalorder %s24, 0
    %p150 = por %p148, %p149
    %s152 = sadd.s32 %s151, 1
    %p155 = scmp.eq.s32.totalorder %s18, 3
    %p156 = scmp.ne.s32.totalorder %s151, %s153
    %p157 = scmp.eq.s32.totalorder %s18, 0
    %p158 = por %p156, %p157
    %p159 = scmp.ne.s32.totalorder %s151, %s153
    %p160 = scmp.eq.s32.totalorder %s23, 3
    %p161 = por %p159, %p160
    %p162 = scmp.ne.s32.totalorder %s153, %s154
    %p163 = scmp.eq.s32.totalorder %s23, 0
    %p164 = por %p162, %p163
    %p165 = scmp.ne.s32.totalorder %s153, %s154
    %p166 = scmp.eq.s32.totalorder %s24, 3
    %p167 = por %p165, %p166
    %p169 = scmp.ne.s32.totalorder %s154, %s168
    %p170 = scmp.eq.s32.totalorder %s24, 0
    %p171 = por %p169, %p170
    %s173 = sadd.s32 %s172, 1
    %p176 = scmp.eq.s32.totalorder %s18, 3
    %p177 = scmp.ne.s32.totalorder %s172, %s174
    %p178 = scmp.eq.s32.totalorder %s18, 0
    %p179 = por %p177, %p178
    %p180 = scmp.ne.s32.totalorder %s172, %s174
    %p181 = scmp.eq.s32.totalorder %s23, 3
    %p182 = por %p180, %p181
    %p183 = scmp.ne.s32.totalorder %s174, %s175
    %p184 = scmp.eq.s32.totalorder %s23, 0
    %p185 = por %p183, %p184
    %p186 = scmp.ne.s32.totalorder %s174, %s175
    %p187 = scmp.eq.s32.totalorder %s24, 3
    %p188 = por %p186, %p187
    %p190 = scmp.ne.s32.totalorder %s175, %s189
    %p191 = scmp.eq.s32.totalorder %s24, 0
    %p192 = por %p190, %p191
    %s194 = sadd.s32 %s193, 1
    %p197 = scmp.eq.s32.totalorder %s18, 3
    %p198 = scmp.ne.s32.totalorder %s193, %s195
    %p199 = scmp.eq.s32.totalorder %s18, 0
    %p200 = por %p198, %p199
    %p201 = scmp.ne.s32.totalorder %s193, %s195
    %p202 = scmp.eq.s32.totalorder %s23, 3
    %p203 = por %p201, %p202
    %p204 = scmp.ne.s32.totalorder %s195, %s196
    %p205 = scmp.eq.s32.totalorder %s23, 0
    %p206 = por %p204, %p205
    %p207 = scmp.ne.s32.totalorder %s195, %s196
    %p208 = scmp.eq.s32.totalorder %s24, 3
    %p209 = por %p207, %p208
    %p211 = scmp.ne.s32.totalorder %s196, %s210
    %p212 = scmp.eq.s32.totalorder %s24, 0
    %p213 = por %p211, %p212
    %s215 = sadd.s32 %s214, 1
    %p218 = scmp.eq.s32.totalorder %s18, 3
    %p219 = scmp.ne.s32.totalorder %s214, %s216
    %p220 = scmp.eq.s32.totalorder %s18, 0
    %p221 = por %p219, %p220
    %p222 = scmp.ne.s32.totalorder %s214, %s216
    %p223 = scmp.eq.s32.totalorder %s23, 3
    %p224 = por %p222, %p223
    %p225 = scmp.ne.s32.totalorder %s216, %s217
    %p226 = scmp.eq.s32.totalorder %s23, 0
    %p227 = por %p225, %p226
    %p228 = scmp.ne.s32.totalorder %s216, %s217
    %p229 = scmp.eq.s32.totalorder %s24, 3
    %p230 = por %p228, %p229
    %p232 = scmp.ne.s32.totalorder %s217, %s231
    %p233 = scmp.eq.s32.totalorder %s24, 0
    %p234 = por %p232, %p233
    %s236 = sadd.s32 %s235, 1
    %p239 = scmp.eq.s32.totalorder %s18, 3
    %p240 = scmp.ne.s32.totalorder %s235, %s237
    %p241 = scmp.eq.s32.totalorder %s18, 0
    %p242 = por %p240, %p241
    %p243 = scmp.ne.s32.totalorder %s235, %s237
    %p244 = scmp.eq.s32.totalorder %s23, 3
    %p245 = por %p243, %p244
    %p246 = scmp.ne.s32.totalorder %s237, %s238
    %p247 = scmp.eq.s32.totalorder %s23, 0
    %p248 = por %p246, %p247
    %p249 = scmp.ne.s32.totalorder %s237, %s238
    %p250 = scmp.eq.s32.totalorder %s24, 3
    %p251 = por %p249, %p250
    %p253 = scmp.ne.s32.totalorder %s238, %s252
    %p254 = scmp.eq.s32.totalorder %s24, 0
    %p255 = por %p253, %p254
    %s257 = sadd.s32 %s256, 1
    %p260 = scmp.eq.s32.totalorder %s18, 3
    %p261 = scmp.ne.s32.totalorder %s256, %s258
    %p262 = scmp.eq.s32.totalorder %s18, 0
    %p263 = por %p261, %p262
    %p264 = scmp.ne.s32.totalorder %s256, %s258
    %p265 = scmp.eq.s32.totalorder %s23, 3
    %p266 = por %p264, %p265
    %p267 = scmp.ne.s32.totalorder %s258, %s259
    %p268 = scmp.eq.s32.totalorder %s23, 0
    %p269 = por %p267, %p268
    %p270 = scmp.ne.s32.totalorder %s258, %s259
    %p271 = scmp.eq.s32.totalorder %s24, 3
    %p272 = por %p270, %p271
    %p274 = scmp.ne.s32.totalorder %s259, %s273
    %p275 = scmp.eq.s32.totalorder %s24, 0
    %p276 = por %p274, %p275
    %s278 = sadd.s32 %s277, 1
    %p281 = scmp.eq.s32.totalorder %s18, 3
    %p282 = scmp.ne.s32.totalorder %s277, %s279
    %p283 = scmp.eq.s32.totalorder %s18, 0
    %p284 = por %p282, %p283
    %p285 = scmp.ne.s32.totalorder %s277, %s279
    %p286 = scmp.eq.s32.totalorder %s23, 3
    %p287 = por %p285, %p286
    %p288 = scmp.ne.s32.totalorder %s279, %s280
    %p289 = scmp.eq.s32.totalorder %s23, 0
    %p290 = por %p288, %p289
    %p291 = scmp.ne.s32.totalorder %s279, %s280
    %p292 = scmp.eq.s32.totalorder %s24, 3
    %p293 = por %p291, %p292
    %p295 = scmp.ne.s32.totalorder %s280, %s294
    %p296 = scmp.eq.s32.totalorder %s24, 0
    %p297 = por %p295, %p296
    %s299 = sadd.s32 %s298, 1
    %p302 = scmp.eq.s32.totalorder %s18, 3
    %p303 = scmp.ne.s32.totalorder %s298, %s300
    %p304 = scmp.eq.s32.totalorder %s18, 0
    %p305 = por %p303, %p304
    %p306 = scmp.ne.s32.totalorder %s298, %s300
    %p307 = scmp.eq.s32.totalorder %s23, 3
    %p308 = por %p306, %p307
    %p309 = scmp.ne.s32.totalorder %s300, %s301
    %p310 = scmp.eq.s32.totalorder %s23, 0
    %p311 = por %p309, %p310
    %p312 = scmp.ne.s32.totalorder %s300, %s301
    %p313 = scmp.eq.s32.totalorder %s24, 3
    %p314 = por %p312, %p313
    %p316 = scmp.ne.s32.totalorder %s301, %s315
    %p317 = scmp.eq.s32.totalorder %s24, 0
    %p318 = por %p316, %p317
    %s319 = ssub.s32 %s25, %s37
    %s320 = ssub.s32 %s26, %s33
    %s321 = sor.u32 %s319, %s320
    %p322 = scmp.eq.s32.totalorder %s321, 0
    %s324 = sadd.s32 %s323, 1
    %s325 = scalar_select %p322, %s323, %s324
    %p328 = pneg %p322
    %p329 = scmp.eq.s32.totalorder %s18, 3
    %p330 = por %p328, %p329
    %p331 = scmp.ne.s32.totalorder %s323, %s326
    %p332 = scmp.eq.s32.totalorder %s18, 0
    %p333 = por %p331, %p332
    %p334 = scmp.ne.s32.totalorder %s323, %s326
    %p335 = scmp.eq.s32.totalorder %s23, 3
    %p336 = por %p334, %p335
    %p337 = scmp.ne.s32.totalorder %s326, %s327
    %p338 = scmp.eq.s32.totalorder %s23, 0
    %p339 = por %p337, %p338
    %p340 = scmp.ne.s32.totalorder %s326, %s327
    %p341 = scmp.eq.s32.totalorder %s24, 3
    %p342 = por %p340, %p341
    %p344 = scmp.ne.s32.totalorder %s327, %s343
    %p345 = scmp.eq.s32.totalorder %s24, 0
    %p346 = por %p344, %p345
    %p347 = scmp.le.s32.totalorder 1, %s18
    %p348 = scmp.lt.s32.totalorder %s18, 5
    %p349 = pnand %p347, %p348
    %p350 = pneg %p349
    // Predicated region
    $region9: #{tpu_custom_call.1} parent=5 // pred_check
      _
    $region10: #{tpu_custom_call.1} parent=5 // pred_check_branch
      %352 = sbr.rel (%p349) target = $region12
    $region11: #{tpu_custom_call.1} parent=5 // pred_region
      %s353 = ssub.s32 %s18, 1
      // Predicated region
      $region13: #{tpu_custom_call.1} parent=11 // pred_check
        %p354 = pneg %p143
      $region14: #{tpu_custom_call.1} parent=11 // pred_check_branch
        %356 = sbr.rel (%p354) target = $region16
      $region15: #{tpu_custom_call.1} parent=11 // pred_region
        _
      $region16: #{tpu_custom_call.1} parent=11 // pred_fallthru
        _
      // Predicated region
      $region17: #{tpu_custom_call.1} parent=11 // pred_check
        %p357 = pneg %p164
      $region18: #{tpu_custom_call.1} parent=11 // pred_check_branch
        %359 = sbr.rel (%p357) target = $region20
      $region19: #{tpu_custom_call.1} parent=11 // pred_region
        _
      $region20: #{tpu_custom_call.1} parent=11 // pred_fallthru
        _
      // Predicated region
      $region21: #{tpu_custom_call.1} parent=11 // pred_check
        %p360 = pneg %p185
      $region22: #{tpu_custom_call.1} parent=11 // pred_check_branch
        %362 = sbr.rel (%p360) target = $region24
      $region23: #{tpu_custom_call.1} parent=11 // pred_region
        _
      $region24: #{tpu_custom_call.1} parent=11 // pred_fallthru
        _
      // Predicated region
      $region25: #{tpu_custom_call.1} parent=11 // pred_check
        %p363 = pneg %p206
      $region26: #{tpu_custom_call.1} parent=11 // pred_check_branch
        %365 = sbr.rel (%p363) target = $region28
      $region27: #{tpu_custom_call.1} parent=11 // pred_region
        _
      $region28: #{tpu_custom_call.1} parent=11 // pred_fallthru
        _
      // Predicated region
      $region29: #{tpu_custom_call.1} parent=11 // pred_check
        %p366 = pneg %p227
      $region30: #{tpu_custom_call.1} parent=11 // pred_check_branch
        %368 = sbr.rel (%p366) target = $region32
      $region31: #{tpu_custom_call.1} parent=11 // pred_region
        _
      $region32: #{tpu_custom_call.1} parent=11 // pred_fallthru
        _
      // Predicated region
      $region33: #{tpu_custom_call.1} parent=11 // pred_check
        %p369 = pneg %p248
      $region34: #{tpu_custom_call.1} parent=11 // pred_check_branch
        %371 = sbr.rel (%p369) target = $region36
      $region35: #{tpu_custom_call.1} parent=11 // pred_region
        _
      $region36: #{tpu_custom_call.1} parent=11 // pred_fallthru
        _
      // Predicated region
      $region37: #{tpu_custom_call.1} parent=11 // pred_check
        %p372 = pneg %p269
      $region38: #{tpu_custom_call.1} parent=11 // pred_check_branch
        %374 = sbr.rel (%p372) target = $region40
      $region39: #{tpu_custom_call.1} parent=11 // pred_region
        _
      $region40: #{tpu_custom_call.1} parent=11 // pred_fallthru
        _
      // Predicated region
      $region41: #{tpu_custom_call.1} parent=11 // pred_check
        %p375 = pneg %p290
      $region42: #{tpu_custom_call.1} parent=11 // pred_check_branch
        %377 = sbr.rel (%p375) target = $region44
      $region43: #{tpu_custom_call.1} parent=11 // pred_region
        _
      $region44: #{tpu_custom_call.1} parent=11 // pred_fallthru
        _
      // Predicated region
      $region45: #{tpu_custom_call.1} parent=11 // pred_check
        %p378 = pneg %p311
      $region46: #{tpu_custom_call.1} parent=11 // pred_check_branch
        %380 = sbr.rel (%p378) target = $region48
      $region47: #{tpu_custom_call.1} parent=11 // pred_region
        _
      $region48: #{tpu_custom_call.1} parent=11 // pred_fallthru
        _
    $region12: #{tpu_custom_call.1} parent=5 // pred_fallthru
      _
    %p381 = scmp.lt.s32.totalorder %s18, 4
    // Predicated region
    $region49: #{tpu_custom_call.1} parent=5 // pred_check
      %p382 = pneg %p381
    $region50: #{tpu_custom_call.1} parent=5 // pred_check_branch
      %384 = sbr.rel (%p382) target = $region52
    $region51: #{tpu_custom_call.1} parent=5 // pred_region
      // Predicated region
      $region53: #{tpu_custom_call.1} parent=51 // pred_check
        %p385 = pneg %p52
      $region54: #{tpu_custom_call.1} parent=51 // pred_check_branch
        %387 = sbr.rel (%p385) target = $region56
      $region55: #{tpu_custom_call.1} parent=51 // pred_region
        %s388 = smul.u32 16, %s26
        %p389 = scmp.lt.s32.totalorder %s25, 1
        %s390 = scalar_select %p389, %s25, 1
        %p391 = scmp.lt.s32.totalorder %s388, 31
        %s392 = scalar_select %p391, %s388, 31
        %s393 = smul.addr %s390, 32
        %s394 = sadd.s32 %s392, %s393
        %s395 = smul.addr %s394, 8
        %s396 = scalar_lea.vmem %s0, %s395
        %s397 = smul.u32 16, %s26
      $region56: #{tpu_custom_call.1} parent=51 // pred_fallthru
        _
      // Predicated region
      $region57: #{tpu_custom_call.1} parent=51 // pred_check
        %p398 = pneg %p88
      $region58: #{tpu_custom_call.1} parent=51 // pred_check_branch
        %400 = sbr.rel (%p398) target = $region60
      $region59: #{tpu_custom_call.1} parent=51 // pred_region
        %s401 = sadd.s32 %s26, 1
        %s402 = smul.u32 %s401, 8
        %p403 = scmp.lt.s32.totalorder %s402, 15
        %s404 = scalar_select %p403, %s402, 15
        %s405 = smul.u32 2, %s404
        %p406 = scmp.lt.s32.totalorder %s25, 1
        %s407 = scalar_select %p406, %s25, 1
        %p408 = scmp.lt.s32.totalorder %s405, 31
        %s409 = scalar_select %p408, %s405, 31
        %s410 = smul.addr %s407, 32
        %s411 = sadd.s32 %s409, %s410
        %s412 = smul.addr %s411, 8
        %s413 = scalar_lea.vmem %s1, %s412
        %s414 = sadd.s32 %s26, 1
        %s415 = smul.u32 %s414, 8
        %p416 = scmp.lt.s32.totalorder %s415, 15
        %s417 = scalar_select %p416, %s415, 15
        %s418 = smul.u32 2, %s417
      $region60: #{tpu_custom_call.1} parent=51 // pred_fallthru
        _
      // Predicated region
      $region61: #{tpu_custom_call.1} parent=51 // pred_check
        %p419 = pneg %p116
      $region62: #{tpu_custom_call.1} parent=51 // pred_check_branch
        %421 = sbr.rel (%p419) target = $region64
      $region63: #{tpu_custom_call.1} parent=51 // pred_region
        %s422 = smul.u32 16, %s26
        %p423 = scmp.lt.s32.totalorder %s25, 1
        %s424 = scalar_select %p423, %s25, 1
        %p425 = scmp.lt.s32.totalorder %s422, 31
        %s426 = scalar_select %p425, %s422, 31
        %s427 = smul.addr %s424, 32
        %s428 = sadd.s32 %s426, %s427
        %s429 = smul.addr %s428, 8
        %s430 = scalar_lea.vmem %s2, %s429
        %s431 = smul.u32 16, %s26
      $region64: #{tpu_custom_call.1} parent=51 // pred_fallthru
        _
    $region52: #{tpu_custom_call.1} parent=5 // pred_fallthru
      _
    %p432 = scmp.le.s32.totalorder 1, %s18
    %p433 = scmp.lt.s32.totalorder %s18, 5
    %p434 = pnand %p432, %p433
    %p435 = pneg %p434
    // Predicated region
    $region65: #{tpu_custom_call.1} parent=5 // pred_check
      _
    $region66: #{tpu_custom_call.1} parent=5 // pred_check_branch
      %437 = sbr.rel (%p434) target = $region68
    $region67: #{tpu_custom_call.1} parent=5 // pred_region
      %s438 = ssub.s32 %s18, 1
      %s439 = smul.u32 16, %s28
      %p440 = scmp.lt.s32.totalorder %s27, 1
      %s441 = scalar_select %p440, %s27, 1
      %p442 = scmp.lt.s32.totalorder %s439, 31
      %s443 = scalar_select %p442, %s439, 31
      %s444 = smul.addr %s441, 32
      %s445 = sadd.s32 %s443, %s444
      %s446 = smul.addr %s445, 8
      %s447 = scalar_lea.vmem %s0, %s446
      %p448 = pneg %p58
      %p449 = pneg %p55
      %s450 = sadd.s32 %s28, 1
      %s451 = smul.u32 %s450, 8
      %p452 = scmp.lt.s32.totalorder %s451, 15
      %s453 = scalar_select %p452, %s451, 15
      %s454 = smul.u32 2, %s453
      %p455 = scmp.lt.s32.totalorder %s27, 1
      %s456 = scalar_select %p455, %s27, 1
      %p457 = scmp.lt.s32.totalorder %s454, 31
      %s458 = scalar_select %p457, %s454, 31
      %s459 = smul.addr %s456, 32
      %s460 = sadd.s32 %s458, %s459
      %s461 = smul.addr %s460, 8
      %s462 = scalar_lea.vmem %s1, %s461
      %p463 = pneg %p94
      %p464 = pneg %p91
      %s465 = smul.u32 16, %s28
      %p466 = scmp.lt.s32.totalorder %s27, 1
      %s467 = scalar_select %p466, %s27, 1
      %p468 = scmp.lt.s32.totalorder %s465, 31
      %s469 = scalar_select %p468, %s465, 31
      %s470 = smul.addr %s467, 32
      %s471 = sadd.s32 %s469, %s470
      %s472 = smul.addr %s471, 8
      %s473 = scalar_lea.vmem %s2, %s472
      %p474 = pneg %p122
      %p475 = pneg %p119
      %p476 = pneg %p143
      %p477 = pneg %p140
      %p478 = pneg %p164
      %p479 = pneg %p161
      %p480 = pneg %p185
      %p481 = pneg %p182
      %p482 = pneg %p206
      %p483 = pneg %p203
      %p484 = pneg %p227
      %p485 = pneg %p224
      %p486 = pneg %p248
      %p487 = pneg %p245
      %p488 = pneg %p269
      %p489 = pneg %p266
      %p490 = pneg %p290
      %p491 = pneg %p287
      %p492 = pneg %p311
      %p493 = pneg %p308
      %p494 = pneg %p339
      %p495 = pneg %p336
      %s496 = smul.u32 16, %s28
      %p497 = scmp.lt.s32.totalorder %s27, 1
      %s498 = scalar_select %p497, %s27, 1
      %p499 = scmp.lt.s32.totalorder %s496, 31
      %s500 = scalar_select %p499, %s496, 31
      %s501 = smul.addr %s498, 32
      %s502 = sadd.s32 %s500, %s501
      %s503 = smul.addr %s502, 8
      %s504 = scalar_lea.vmem %s12, %s503
      %s505 = smul.u32 16, %s28
      %p506 = scmp.lt.s32.totalorder %s27, 1
      %s507 = scalar_select %p506, %s27, 1
      %p508 = scmp.lt.s32.totalorder %s505, 31
      %s509 = scalar_select %p508, %s505, 31
      %s510 = smul.addr %s507, 32
      %s511 = sadd.s32 %s509, %s510
      %s512 = smul.addr %s511, 8
      %s513 = scalar_lea.vmem %s0, %s512
      %s514 = smul.u32 16, %s28
      %s515 = sadd.s32 %s28, 1
      %s516 = smul.u32 %s515, 8
      %p517 = scmp.lt.s32.totalorder %s516, 15
      %s518 = scalar_select %p517, %s516, 15
      %s519 = smul.u32 2, %s518
      %p520 = scmp.lt.s32.totalorder %s27, 1
      %s521 = scalar_select %p520, %s27, 1
      %p522 = scmp.lt.s32.totalorder %s519, 31
      %s523 = scalar_select %p522, %s519, 31
      %s524 = smul.addr %s521, 32
      %s525 = sadd.s32 %s523, %s524
      %s526 = smul.addr %s525, 8
      %s527 = scalar_lea.vmem %s1, %s526
      %s528 = sadd.s32 %s28, 1
      %s529 = smul.u32 %s528, 8
      %p530 = scmp.lt.s32.totalorder %s529, 15
      %s531 = scalar_select %p530, %s529, 15
      %s532 = smul.u32 2, %s531
      %s533 = smul.u32 16, %s28
      %p534 = scmp.lt.s32.totalorder %s27, 1
      %s535 = scalar_select %p534, %s27, 1
      %p536 = scmp.lt.s32.totalorder %s533, 31
      %s537 = scalar_select %p536, %s533, 31
      %s538 = smul.addr %s535, 32
      %s539 = sadd.s32 %s537, %s538
      %s540 = smul.addr %s539, 8
      %s541 = scalar_lea.vmem %s2, %s540
      %s542 = smul.u32 16, %s28
      %s543 = smul.u32 16, %s28
      %p544 = scmp.lt.s32.totalorder %s27, 1
      %s545 = scalar_select %p544, %s27, 1
      %p546 = scmp.lt.s32.totalorder %s543, 31
      %s547 = scalar_select %p546, %s543, 31
      %s548 = smul.addr %s545, 32
      %s549 = sadd.s32 %s547, %s548
      %s550 = smul.addr %s549, 8
      %s551 = scalar_lea.vmem %s12, %s550
      %s552 = smul.u32 16, %s28
      %v554 = vld [vmem:[%s513] sm:$0xff]
      %v555 = vld [vmem:[%s513 + $0x8] sm:$0xff]
      %v556 = vld [vmem:[%s513 + $0x10] sm:$0xff]
      %v557 = vld [vmem:[%s513 + $0x18] sm:$0xff]
      %v558 = vld [vmem:[%s513 + $0x20] sm:$0xff]
      %v559 = vld [vmem:[%s513 + $0x28] sm:$0xff]
      %v560 = vld [vmem:[%s513 + $0x30] sm:$0xff]
      %v561 = vld [vmem:[%s513 + $0x38] sm:$0xff]
      %v562 = vld [vmem:[%s513 + $0x40] sm:$0xff]
      %v563 = vld [vmem:[%s513 + $0x48] sm:$0xff]
      %v564 = vld [vmem:[%s513 + $0x50] sm:$0xff]
      %v565 = vld [vmem:[%s513 + $0x58] sm:$0xff]
      %v566 = vld [vmem:[%s513 + $0x60] sm:$0xff]
      %v567 = vld [vmem:[%s513 + $0x68] sm:$0xff]
      %v568 = vld [vmem:[%s513 + $0x70] sm:$0xff]
      %v569 = vld [vmem:[%s513 + $0x78] sm:$0xff]
      %v570 = vpack.c.bf16 %v555, %v554
      %v571 = vpack.c.bf16 %v557, %v556
      %v572 = vpack.c.bf16 %v559, %v558
      %v573 = vpack.c.bf16 %v561, %v560
      %v574 = vpack.c.bf16 %v563, %v562
      %v575 = vpack.c.bf16 %v565, %v564
      %v576 = vpack.c.bf16 %v567, %v566
      %v577 = vpack.c.bf16 %v569, %v568
      %v578 = vld [vmem:[%s3] sm:$0xf]
      %v579 = vld [vmem:[%s3 + $0x4] sm:$0xf]
      %v580 = vld [vmem:[%s4] sm:$0x1]
      %v582 = vlaneseq
      %v583 = vshrl.u32 %v582, 7
      %v584 = vsub.s32 0, %v583
      %v585 = vrot.slane %v580, %v584
      %v589 = vunpack.c.l.b16 %v578
      %v590 = vunpack.c.l.b16 %v579
      %v591 = vpack.c.b16 %v590, %v589
      %vm593 = vcmask 130048
      %v595 = vsel %vm593, %v570, 0
      %v598 = vsel %vm593, %v571, 0
      %v601 = vsel %vm593, %v572, 0
      %v604 = vsel %vm593, %v573, 0
      %v607 = vsel %vm593, %v574, 0
      %v610 = vsel %vm593, %v575, 0
      %v613 = vsel %vm593, %v576, 0
      %v616 = vsel %vm593, %v577, 0
      %618 = vmatprep.subr.bf16.mxu0 0
      %619 = vmatpush1.bf16.msra.mxu0 %v591
      %620 = vmatprep.subr.bf16.mxu0 0
      %621 = vmatpush1.bf16.msra.mxu0 0
      %622 = vmatprep.subr.bf16.mxu0 0
      %623 = vmatpush1.bf16.msra.mxu0 0
      %624 = vmatprep.subr.bf16.mxu0 0
      %625 = vmatpush1.bf16.msra.mxu0 0
      %626 = vmatprep.subr.bf16.mxu0 0
      %627 = vmatpush1.bf16.msra.mxu0 0
      %628 = vmatprep.subr.bf16.mxu0 0
      %629 = vmatpush1.bf16.msra.mxu0 0
      %630 = vmatprep.subr.bf16.mxu0 0
      %631 = vmatpush1.bf16.msra.mxu0 0
      %632 = vmatprep.subr.bf16.mxu0 0
      %633 = vmatpush1.bf16.msra.mxu0 0
      %634 = vmatprep.subr.bf16.mxu0 0
      %635 = vmatpush1.bf16.msra.mxu0 0
      %636 = vmatprep.subr.bf16.mxu0 0
      %637 = vmatpush1.bf16.msra.mxu0 0
      %638 = vmatprep.subr.bf16.mxu0 0
      %639 = vmatpush1.bf16.msra.mxu0 0
      %640 = vmatprep.subr.bf16.mxu0 0
      %641 = vmatpush1.bf16.msra.mxu0 0
      %642 = vmatprep.subr.bf16.mxu0 0
      %643 = vmatpush1.bf16.msra.mxu0 0
      %644 = vmatprep.subr.bf16.mxu0 0
      %645 = vmatpush1.bf16.msra.mxu0 0
      %646 = vmatprep.subr.bf16.mxu0 0
      %647 = vmatpush1.bf16.msra.mxu0 0
      %648 = vmatprep.subr.bf16.mxu0 0
      %649 = vmatpush1.bf16.msra.mxu0 0
      %650 = vmatprep.mubr.bf16.mxu0 0
      %651 = vmatmul.mubr.bf16.gmra.mrb[0].mxu0 %v595
      %v652 = vpop.f32.mrb[0].mxu0
      %v653 = vadd.f32 %v585, %v652
      %v654 = vpop.f32.mrb[0].mxu0
      %v655 = vpop.f32.mrb[0].mxu0
      %v656 = vadd.f32 %v585, %v655
      %v657 = vpop.f32.mrb[0].mxu0
      %658 = vmatprep.mubr.bf16.mxu0 0
      %659 = vmatmul.mubr.bf16.gmra.mrb[0].mxu0 %v598
      %v660 = vpop.f32.mrb[0].mxu0
      %v661 = vadd.f32 %v585, %v660
      %v662 = vpop.f32.mrb[0].mxu0
      %v663 = vpop.f32.mrb[0].mxu0
      %v664 = vadd.f32 %v585, %v663
      %v665 = vpop.f32.mrb[0].mxu0
      %666 = vmatprep.mubr.bf16.mxu0 0
      %667 = vmatmul.mubr.bf16.gmra.mrb[0].mxu0 %v601
      %v668 = vpop.f32.mrb[0].mxu0
      %v669 = vadd.f32 %v585, %v668
      %v670 = vpop.f32.mrb[0].mxu0
      %v671 = vpop.f32.mrb[0].mxu0
      %v672 = vadd.f32 %v585, %v671
      %v673 = vpop.f32.mrb[0].mxu0
      %674 = vmatprep.mubr.bf16.mxu0 0
      %675 = vmatmul.mubr.bf16.gmra.mrb[0].mxu0 %v604
      %v676 = vpop.f32.mrb[0].mxu0
      %v677 = vadd.f32 %v585, %v676
      %v678 = vpop.f32.mrb[0].mxu0
      %v679 = vpop.f32.mrb[0].mxu0
      %v680 = vadd.f32 %v585, %v679
      %v681 = vpop.f32.mrb[0].mxu0
      %682 = vmatprep.mubr.bf16.mxu0 0
      %683 = vmatmul.mubr.bf16.gmra.mrb[0].mxu0 %v607
      %v684 = vpop.f32.mrb[0].mxu0
      %v685 = vadd.f32 %v585, %v684
      %v686 = vpop.f32.mrb[0].mxu0
      %v687 = vpop.f32.mrb[0].mxu0
      %v688 = vadd.f32 %v585, %v687
      %v689 = vpop.f32.mrb[0].mxu0
      %690 = vmatprep.mubr.bf16.mxu0 0
      %691 = vmatmul.mubr.bf16.gmra.mrb[0].mxu0 %v610
      %v692 = vpop.f32.mrb[0].mxu0
      %v693 = vadd.f32 %v585, %v692
      %v694 = vpop.f32.mrb[0].mxu0
      %v695 = vpop.f32.mrb[0].mxu0
      %v696 = vadd.f32 %v585, %v695
      %v697 = vpop.f32.mrb[0].mxu0
      %698 = vmatprep.mubr.bf16.mxu0 0
      %699 = vmatmul.mubr.bf16.gmra.mrb[0].mxu0 %v613
      %v700 = vpop.f32.mrb[0].mxu0
      %v701 = vadd.f32 %v585, %v700
      %v702 = vpop.f32.mrb[0].mxu0
      %v703 = vpop.f32.mrb[0].mxu0
      %v704 = vadd.f32 %v585, %v703
      %v705 = vpop.f32.mrb[0].mxu0
      %706 = vmatprep.mubr.bf16.mxu0 0
      %707 = vmatmul.mubr.bf16.gmra.mrb[0].mxu0 %v616
      %v708 = vpop.f32.mrb[0].mxu0
      %v709 = vadd.f32 %v585, %v708
      %v710 = vpop.f32.mrb[0].mxu0
      %v711 = vpop.f32.mrb[0].mxu0
      %v712 = vadd.f32 %v585, %v711
      %v713 = vpop.f32.mrb[0].mxu0
      %714 = vdwg.mxu0
      %v715 = vmax.f32 %v653, 0.0
      %v716 = vmax.f32 %v656, 0.0
      %v717 = vmax.f32 %v661, 0.0
      %v718 = vmax.f32 %v664, 0.0
      %v719 = vmax.f32 %v669, 0.0
      %v720 = vmax.f32 %v672, 0.0
      %v721 = vmax.f32 %v677, 0.0
      %v722 = vmax.f32 %v680, 0.0
      %v723 = vmax.f32 %v685, 0.0
      %v724 = vmax.f32 %v688, 0.0
      %v725 = vmax.f32 %v693, 0.0
      %v726 = vmax.f32 %v696, 0.0
      %v727 = vmax.f32 %v701, 0.0
      %v728 = vmax.f32 %v704, 0.0
      %v729 = vmax.f32 %v709, 0.0
      %v730 = vmax.f32 %v712, 0.0
      %v731 = vld [vmem:[%s527] sm:$0xff]
      %v732 = vld [vmem:[%s527 + $0x8] sm:$0xff]
      %v733 = vpack.c.bf16 %v732, %v731
      %v735 = vsel %vm593, %v733, 0
      %737 = vmatprep.subr.bf16.mxu0 0
      %738 = vmatpush1.bf16.msra.mxu0 %v591
      %739 = vmatprep.subr.bf16.mxu0 0
      %740 = vmatpush1.bf16.msra.mxu0 0
      %741 = vmatprep.subr.bf16.mxu0 0
      %742 = vmatpush1.bf16.msra.mxu0 0
      %743 = vmatprep.subr.bf16.mxu0 0
      %744 = vmatpush1.bf16.msra.mxu0 0
      %745 = vmatprep.subr.bf16.mxu0 0
      %746 = vmatpush1.bf16.msra.mxu0 0
      %747 = vmatprep.subr.bf16.mxu0 0
      %748 = vmatpush1.bf16.msra.mxu0 0
      %749 = vmatprep.subr.bf16.mxu0 0
      %750 = vmatpush1.bf16.msra.mxu0 0
      %751 = vmatprep.subr.bf16.mxu0 0
      %752 = vmatpush1.bf16.msra.mxu0 0
      %753 = vmatprep.subr.bf16.mxu0 0
      %754 = vmatpush1.bf16.msra.mxu0 0
      %755 = vmatprep.subr.bf16.mxu0 0
      %756 = vmatpush1.bf16.msra.mxu0 0
      %757 = vmatprep.subr.bf16.mxu0 0
      %758 = vmatpush1.bf16.msra.mxu0 0
      %759 = vmatprep.subr.bf16.mxu0 0
      %760 = vmatpush1.bf16.msra.mxu0 0
      %761 = vmatprep.subr.bf16.mxu0 0
      %762 = vmatpush1.bf16.msra.mxu0 0
      %763 = vmatprep.subr.bf16.mxu0 0
      %764 = vmatpush1.bf16.msra.mxu0 0
      %765 = vmatprep.subr.bf16.mxu0 0
      %766 = vmatpush1.bf16.msra.mxu0 0
      %767 = vmatprep.subr.bf16.mxu0 0
      %768 = vmatpush1.bf16.msra.mxu0 0
      %769 = vmatprep.mubr.bf16.mxu0 0
      %770 = vmatmul.mubr.bf16.gmra.mrb[0].mxu0 %v735
      %v771 = vpop.f32.mrb[0].mxu0
      %v772 = vadd.f32 %v585, %v771
      %v773 = vpop.f32.mrb[0].mxu0
      %v774 = vpop.f32.mrb[0].mxu0
      %v775 = vadd.f32 %v585, %v774
      %v776 = vpop.f32.mrb[0].mxu0
      %777 = vdwg.mxu0
      %v778 = vmax.f32 %v772, 0.0
      %v779 = vmax.f32 %v775, 0.0
      %p780 = scmp.eq.s32.totalorder %s28, 1
      %s781 = scalar_select %p780, 1, 0
      %s782 = scvt.s32.f32 %s781
      %s783 = ssub.f32 1.0, %s782
      %v784 = vstv %s783
      %v785 = vmul.f32 %v778, %v784
      %v786 = vmul.f32 %v779, %v784
      %v787 = vlaneseq
      %v788 = vshrl.u32 %v787, 7
      %v789 = vadd.s32 %v788, 8
      %v790 = vadd.s32 %v788, 16
      %v791 = vadd.s32 %v788, 24
      %v792 = vadd.s32 %v788, 32
      %v793 = vadd.s32 %v788, 40
      %v794 = vadd.s32 %v788, 48
      %v795 = vadd.s32 %v788, 56
      %v796 = vadd.s32 %v788, 64
      %v797 = vadd.s32 %v788, 72
      %v798 = vadd.s32 %v788, 80
      %v799 = vadd.s32 %v788, 88
      %v800 = vadd.s32 %v788, 96
      %v801 = vadd.s32 %v788, 104
      %v802 = vadd.s32 %v788, 112
      %v803 = vadd.s32 %v788, 120
      %v804 = vand.u32 %v788, 15
      %v805 = vand.u32 %v789, 15
      %v806 = vand.u32 %v790, 15
      %v807 = vand.u32 %v791, 15
      %v808 = vand.u32 %v792, 15
      %v809 = vand.u32 %v793, 15
      %v810 = vand.u32 %v794, 15
      %v811 = vand.u32 %v795, 15
      %v812 = vand.u32 %v796, 15
      %v813 = vand.u32 %v797, 15
      %v814 = vand.u32 %v798, 15
      %v815 = vand.u32 %v799, 15
      %v816 = vand.u32 %v800, 15
      %v817 = vand.u32 %v801, 15
      %v818 = vand.u32 %v802, 15
      %v819 = vand.u32 %v803, 15
      %vm820 = vcmp.ne.s32.totalorder %v804, 15
      %vm821 = vcmp.ne.s32.totalorder %v805, 15
      %vm822 = vcmp.ne.s32.totalorder %v806, 15
      %vm823 = vcmp.ne.s32.totalorder %v807, 15
      %vm824 = vcmp.ne.s32.totalorder %v808, 15
      %vm825 = vcmp.ne.s32.totalorder %v809, 15
      %vm826 = vcmp.ne.s32.totalorder %v810, 15
      %vm827 = vcmp.ne.s32.totalorder %v811, 15
      %vm828 = vcmp.ne.s32.totalorder %v812, 15
      %vm829 = vcmp.ne.s32.totalorder %v813, 15
      %vm830 = vcmp.ne.s32.totalorder %v814, 15
      %vm831 = vcmp.ne.s32.totalorder %v815, 15
      %vm832 = vcmp.ne.s32.totalorder %v816, 15
      %vm833 = vcmp.ne.s32.totalorder %v817, 15
      %vm834 = vcmp.ne.s32.totalorder %v818, 15
      %vm835 = vcmp.ne.s32.totalorder %v819, 15
      %vm852 = vcmask 1046528
      %v853 = vrot.slane %v715, 1
      %v854 = vrot.slane %v716, 1
      %v855 = vsel %vm852, %v853, %v854
      %v856 = vrot.slane %v717, 1
      %v857 = vsel %vm852, %v854, %v856
      %v858 = vrot.slane %v718, 1
      %v859 = vsel %vm852, %v856, %v858
      %v860 = vrot.slane %v719, 1
      %v861 = vsel %vm852, %v858, %v860
      %v862 = vrot.slane %v720, 1
      %v863 = vsel %vm852, %v860, %v862
      %v864 = vrot.slane %v721, 1
      %v865 = vsel %vm852, %v862, %v864
      %v866 = vrot.slane %v722, 1
      %v867 = vsel %vm852, %v864, %v866
      %v868 = vrot.slane %v723, 1
      %v869 = vsel %vm852, %v866, %v868
      %v870 = vrot.slane %v724, 1
      %v871 = vsel %vm852, %v868, %v870
      %v872 = vrot.slane %v725, 1
      %v873 = vsel %vm852, %v870, %v872
      %v874 = vrot.slane %v726, 1
      %v875 = vsel %vm852, %v872, %v874
      %v876 = vrot.slane %v727, 1
      %v877 = vsel %vm852, %v874, %v876
      %v878 = vrot.slane %v728, 1
      %v879 = vsel %vm852, %v876, %v878
      %v880 = vrot.slane %v729, 1
      %v881 = vsel %vm852, %v878, %v880
      %v882 = vrot.slane %v730, 1
      %v883 = vsel %vm852, %v880, %v882
      %v900 = vsel %vm852, %v882, 0.0
      %v901 = vsel %vm820, 1, 0
      %v902 = vsel %vm821, 1, 0
      %v903 = vsel %vm822, 1, 0
      %v904 = vsel %vm823, 1, 0
      %v905 = vsel %vm824, 1, 0
      %v906 = vsel %vm825, 1, 0
      %v907 = vsel %vm826, 1, 0
      %v908 = vsel %vm827, 1, 0
      %v909 = vsel %vm828, 1, 0
      %v910 = vsel %vm829, 1, 0
      %v911 = vsel %vm830, 1, 0
      %v912 = vsel %vm831, 1, 0
      %v913 = vsel %vm832, 1, 0
      %v914 = vsel %vm833, 1, 0
      %v915 = vsel %vm834, 1, 0
      %v916 = vsel %vm835, 1, 0
      %vm917 = vcmp.eq.s32.totalorder %v901, 1
      %vm918 = vcmp.eq.s32.totalorder %v902, 1
      %vm919 = vcmp.eq.s32.totalorder %v903, 1
      %vm920 = vcmp.eq.s32.totalorder %v904, 1
      %vm921 = vcmp.eq.s32.totalorder %v905, 1
      %vm922 = vcmp.eq.s32.totalorder %v906, 1
      %vm923 = vcmp.eq.s32.totalorder %v907, 1
      %vm924 = vcmp.eq.s32.totalorder %v908, 1
      %vm925 = vcmp.eq.s32.totalorder %v909, 1
      %vm926 = vcmp.eq.s32.totalorder %v910, 1
      %vm927 = vcmp.eq.s32.totalorder %v911, 1
      %vm928 = vcmp.eq.s32.totalorder %v912, 1
      %vm929 = vcmp.eq.s32.totalorder %v913, 1
      %vm930 = vcmp.eq.s32.totalorder %v914, 1
      %vm931 = vcmp.eq.s32.totalorder %v915, 1
      %vm932 = vcmp.eq.s32.totalorder %v916, 1
      %v933 = vsel %vm917, %v855, 0.0
      %v934 = vsel %vm918, %v857, 0.0
      %v935 = vsel %vm919, %v859, 0.0
      %v936 = vsel %vm920, %v861, 0.0
      %v937 = vsel %vm921, %v863, 0.0
      %v938 = vsel %vm922, %v865, 0.0
      %v939 = vsel %vm923, %v867, 0.0
      %v940 = vsel %vm924, %v869, 0.0
      %v941 = vsel %vm925, %v871, 0.0
      %v942 = vsel %vm926, %v873, 0.0
      %v943 = vsel %vm927, %v875, 0.0
      %v944 = vsel %vm928, %v877, 0.0
      %v945 = vsel %vm929, %v879, 0.0
      %v946 = vsel %vm930, %v881, 0.0
      %v947 = vsel %vm931, %v883, 0.0
      %v948 = vsel %vm932, %v900, 0.0
      %v951 = vrot.slane %v785, 1
      %v952 = vsel %vm852, %v882, %v951
      %v953 = vrot.slane %v786, 1
      %v954 = vsel %vm852, %v951, %v953
      %v958 = vsel %vm852, %v953, 0.0
      %v959 = vsel %vm917, %v859, 0.0
      %v960 = vsel %vm918, %v861, 0.0
      %v961 = vsel %vm919, %v863, 0.0
      %v962 = vsel %vm920, %v865, 0.0
      %v963 = vsel %vm921, %v867, 0.0
      %v964 = vsel %vm922, %v869, 0.0
      %v965 = vsel %vm923, %v871, 0.0
      %v966 = vsel %vm924, %v873, 0.0
      %v967 = vsel %vm925, %v875, 0.0
      %v968 = vsel %vm926, %v877, 0.0
      %v969 = vsel %vm927, %v879, 0.0
      %v970 = vsel %vm928, %v881, 0.0
      %v971 = vsel %vm929, %v883, 0.0
      %v972 = vsel %vm930, %v952, 0.0
      %v973 = vsel %vm931, %v954, 0.0
      %v974 = vsel %vm932, %v958, 0.0
      %975 = vrot.lane.b32.xlu0 %v715, 4
      %v976 = vpop.permute.xlu0 %975
      %977 = vrot.lane.b32.xlu0 %v716, 4
      %v978 = vpop.permute.xlu0 %977
      %979 = vrot.lane.b32.xlu0 %v717, 4
      %v980 = vpop.permute.xlu0 %979
      %981 = vrot.lane.b32.xlu0 %v718, 4
      %v982 = vpop.permute.xlu0 %981
      %983 = vrot.lane.b32.xlu0 %v719, 4
      %v984 = vpop.permute.xlu0 %983
      %985 = vrot.lane.b32.xlu0 %v720, 4
      %v986 = vpop.permute.xlu0 %985
      %987 = vrot.lane.b32.xlu0 %v721, 4
      %v988 = vpop.permute.xlu0 %987
      %989 = vrot.lane.b32.xlu0 %v722, 4
      %v990 = vpop.permute.xlu0 %989
      %991 = vrot.lane.b32.xlu0 %v723, 4
      %v992 = vpop.permute.xlu0 %991
      %993 = vrot.lane.b32.xlu0 %v724, 4
      %v994 = vpop.permute.xlu0 %993
      %995 = vrot.lane.b32.xlu0 %v725, 4
      %v996 = vpop.permute.xlu0 %995
      %997 = vrot.lane.b32.xlu0 %v726, 4
      %v998 = vpop.permute.xlu0 %997
      %999 = vrot.lane.b32.xlu0 %v727, 4
      %v1000 = vpop.permute.xlu0 %999
      %1001 = vrot.lane.b32.xlu0 %v728, 4
      %v1002 = vpop.permute.xlu0 %1001
      %1003 = vrot.lane.b32.xlu0 %v729, 4
      %v1004 = vpop.permute.xlu0 %1003
      %1005 = vrot.lane.b32.xlu0 %v730, 4
      %v1006 = vpop.permute.xlu0 %1005
      %1023 = vrot.lane.b32.xlu0 %v717, 8
      %v1024 = vpop.permute.xlu0 %1023
      %1025 = vrot.lane.b32.xlu0 %v718, 8
      %v1026 = vpop.permute.xlu0 %1025
      %1027 = vrot.lane.b32.xlu0 %v719, 8
      %v1028 = vpop.permute.xlu0 %1027
      %1029 = vrot.lane.b32.xlu0 %v720, 8
      %v1030 = vpop.permute.xlu0 %1029
      %1031 = vrot.lane.b32.xlu0 %v721, 8
      %v1032 = vpop.permute.xlu0 %1031
      %1033 = vrot.lane.b32.xlu0 %v722, 8
      %v1034 = vpop.permute.xlu0 %1033
      %1035 = vrot.lane.b32.xlu0 %v723, 8
      %v1036 = vpop.permute.xlu0 %1035
      %1037 = vrot.lane.b32.xlu0 %v724, 8
      %v1038 = vpop.permute.xlu0 %1037
      %1039 = vrot.lane.b32.xlu0 %v725, 8
      %v1040 = vpop.permute.xlu0 %1039
      %1041 = vrot.lane.b32.xlu0 %v726, 8
      %v1042 = vpop.permute.xlu0 %1041
      %1043 = vrot.lane.b32.xlu0 %v727, 8
      %v1044 = vpop.permute.xlu0 %1043
      %1045 = vrot.lane.b32.xlu0 %v728, 8
      %v1046 = vpop.permute.xlu0 %1045
      %1047 = vrot.lane.b32.xlu0 %v729, 8
      %v1048 = vpop.permute.xlu0 %1047
      %1049 = vrot.lane.b32.xlu0 %v730, 8
      %v1050 = vpop.permute.xlu0 %1049
      %1051 = vrot.lane.b32.xlu0 %v785, 8
      %v1052 = vpop.permute.xlu0 %1051
      %1053 = vrot.lane.b32.xlu0 %v786, 8
      %v1054 = vpop.permute.xlu0 %1053
      %1087 = vrot.lane.b32.xlu0 %v959, 12
      %v1088 = vpop.permute.xlu0 %1087
      %1089 = vrot.lane.b32.xlu0 %v960, 12
      %v1090 = vpop.permute.xlu0 %1089
      %1091 = vrot.lane.b32.xlu0 %v961, 12
      %v1092 = vpop.permute.xlu0 %1091
      %1093 = vrot.lane.b32.xlu0 %v962, 12
      %v1094 = vpop.permute.xlu0 %1093
      %1095 = vrot.lane.b32.xlu0 %v963, 12
      %v1096 = vpop.permute.xlu0 %1095
      %1097 = vrot.lane.b32.xlu0 %v964, 12
      %v1098 = vpop.permute.xlu0 %1097
      %1099 = vrot.lane.b32.xlu0 %v965, 12
      %v1100 = vpop.permute.xlu0 %1099
      %1101 = vrot.lane.b32.xlu0 %v966, 12
      %v1102 = vpop.permute.xlu0 %1101
      %1103 = vrot.lane.b32.xlu0 %v967, 12
      %v1104 = vpop.permute.xlu0 %1103
      %1105 = vrot.lane.b32.xlu0 %v968, 12
      %v1106 = vpop.permute.xlu0 %1105
      %1107 = vrot.lane.b32.xlu0 %v969, 12
      %v1108 = vpop.permute.xlu0 %1107
      %1109 = vrot.lane.b32.xlu0 %v970, 12
      %v1110 = vpop.permute.xlu0 %1109
      %1111 = vrot.lane.b32.xlu0 %v971, 12
      %v1112 = vpop.permute.xlu0 %1111
      %1113 = vrot.lane.b32.xlu0 %v972, 12
      %v1114 = vpop.permute.xlu0 %1113
      %1115 = vrot.lane.b32.xlu0 %v973, 12
      %v1116 = vpop.permute.xlu0 %1115
      %1117 = vrot.lane.b32.xlu0 %v974, 12
      %v1118 = vpop.permute.xlu0 %1117
      %vm1135 = vcmask 31744
      %v1136 = vsel %vm1135, %v933, %v976
      %v1137 = vsel %vm1135, %v934, %v978
      %v1138 = vsel %vm1135, %v935, %v980
      %v1139 = vsel %vm1135, %v936, %v982
      %v1140 = vsel %vm1135, %v937, %v984
      %v1141 = vsel %vm1135, %v938, %v986
      %v1142 = vsel %vm1135, %v939, %v988
      %v1143 = vsel %vm1135, %v940, %v990
      %v1144 = vsel %vm1135, %v941, %v992
      %v1145 = vsel %vm1135, %v942, %v994
      %v1146 = vsel %vm1135, %v943, %v996
      %v1147 = vsel %vm1135, %v944, %v998
      %v1148 = vsel %vm1135, %v945, %v1000
      %v1149 = vsel %vm1135, %v946, %v1002
      %v1150 = vsel %vm1135, %v947, %v1004
      %v1151 = vsel %vm1135, %v948, %v1006
      %vm1152 = vcmask 64512
      %v1153 = vsel %vm1152, %v1136, %v1024
      %v1154 = vsel %vm1152, %v1137, %v1026
      %v1155 = vsel %vm1152, %v1138, %v1028
      %v1156 = vsel %vm1152, %v1139, %v1030
      %v1157 = vsel %vm1152, %v1140, %v1032
      %v1158 = vsel %vm1152, %v1141, %v1034
      %v1159 = vsel %vm1152, %v1142, %v1036
      %v1160 = vsel %vm1152, %v1143, %v1038
      %v1161 = vsel %vm1152, %v1144, %v1040
      %v1162 = vsel %vm1152, %v1145, %v1042
      %v1163 = vsel %vm1152, %v1146, %v1044
      %v1164 = vsel %vm1152, %v1147, %v1046
      %v1165 = vsel %vm1152, %v1148, %v1048
      %v1166 = vsel %vm1152, %v1149, %v1050
      %v1167 = vsel %vm1152, %v1150, %v1052
      %v1168 = vsel %vm1152, %v1151, %v1054
      %vm1169 = vcmask 97280
      %v1170 = vsel %vm1169, %v1153, %v1088
      %v1171 = vsel %vm1169, %v1154, %v1090
      %v1172 = vsel %vm1169, %v1155, %v1092
      %v1173 = vsel %vm1169, %v1156, %v1094
      %v1174 = vsel %vm1169, %v1157, %v1096
      %v1175 = vsel %vm1169, %v1158, %v1098
      %v1176 = vsel %vm1169, %v1159, %v1100
      %v1177 = vsel %vm1169, %v1160, %v1102
      %v1178 = vsel %vm1169, %v1161, %v1104
      %v1179 = vsel %vm1169, %v1162, %v1106
      %v1180 = vsel %vm1169, %v1163, %v1108
      %v1181 = vsel %vm1169, %v1164, %v1110
      %v1182 = vsel %vm1169, %v1165, %v1112
      %v1183 = vsel %vm1169, %v1166, %v1114
      %v1184 = vsel %vm1169, %v1167, %v1116
      %v1185 = vsel %vm1169, %v1168, %v1118
      %v1186 = vpack.c.bf16 %v1171, %v1170
      %v1187 = vpack.c.bf16 %v1173, %v1172
      %v1188 = vpack.c.bf16 %v1175, %v1174
      %v1189 = vpack.c.bf16 %v1177, %v1176
      %v1190 = vpack.c.bf16 %v1179, %v1178
      %v1191 = vpack.c.bf16 %v1181, %v1180
      %v1192 = vpack.c.bf16 %v1183, %v1182
      %v1193 = vpack.c.bf16 %v1185, %v1184
      %v1194 = vld [vmem:[%s9] sm:$0x1]
      %v1195 = vld [vmem:[%s5] sm:$0x3]
      %v1197 = vlaneseq
      %v1198 = vshrl.u32 %v1197, 7
      %v1199 = vsub.s32 0, %v1198
      %v1200 = vrot.slane %v1194, %v1199
      %1210 = vrot.lane.b32.xlu0 %v1186, 124
      %v1211 = vpop.permute.xlu0 %1210
      %1212 = vrot.lane.b32.xlu0 %v1187, 124
      %v1213 = vpop.permute.xlu0 %1212
      %1214 = vrot.lane.b32.xlu0 %v1188, 124
      %v1215 = vpop.permute.xlu0 %1214
      %1216 = vrot.lane.b32.xlu0 %v1189, 124
      %v1217 = vpop.permute.xlu0 %1216
      %1218 = vrot.lane.b32.xlu0 %v1190, 124
      %v1219 = vpop.permute.xlu0 %1218
      %1220 = vrot.lane.b32.xlu0 %v1191, 124
      %v1221 = vpop.permute.xlu0 %1220
      %1222 = vrot.lane.b32.xlu0 %v1192, 124
      %v1223 = vpop.permute.xlu0 %1222
      %1224 = vrot.lane.b32.xlu0 %v1193, 124
      %v1225 = vpop.permute.xlu0 %1224
      %v1227 = vsel %vm1135, %v1211, 0
      %v1230 = vsel %vm1135, %v1213, 0
      %v1233 = vsel %vm1135, %v1215, 0
      %v1236 = vsel %vm1135, %v1217, 0
      %v1239 = vsel %vm1135, %v1219, 0
      %v1242 = vsel %vm1135, %v1221, 0
      %v1245 = vsel %vm1135, %v1223, 0
      %v1248 = vsel %vm1135, %v1225, 0
      %vm1250 = vcmask 1041408
      %v1252 = vsel %vm1250, %v1195, 0
      %1254 = vmatprep.subr.bf16.mxu0 0
      %1255 = vmatpush1.bf16.msra.mxu0 %v1252
      %1256 = vmatprep.subr.bf16.mxu0 0
      %1257 = vmatpush1.bf16.msra.mxu0 0
      %1258 = vmatprep.subr.bf16.mxu0 0
      %1259 = vmatpush1.bf16.msra.mxu0 0
      %1260 = vmatprep.subr.bf16.mxu0 0
      %1261 = vmatpush1.bf16.msra.mxu0 0
      %1262 = vmatprep.subr.bf16.mxu0 0
      %1263 = vmatpush1.bf16.msra.mxu0 0
      %1264 = vmatprep.subr.bf16.mxu0 0
      %1265 = vmatpush1.bf16.msra.mxu0 0
      %1266 = vmatprep.subr.bf16.mxu0 0
      %1267 = vmatpush1.bf16.msra.mxu0 0
      %1268 = vmatprep.subr.bf16.mxu0 0
      %1269 = vmatpush1.bf16.msra.mxu0 0
      %1270 = vmatprep.subr.bf16.mxu0 0
      %1271 = vmatpush1.bf16.msra.mxu0 0
      %1272 = vmatprep.subr.bf16.mxu0 0
      %1273 = vmatpush1.bf16.msra.mxu0 0
      %1274 = vmatprep.subr.bf16.mxu0 0
      %1275 = vmatpush1.bf16.msra.mxu0 0
      %1276 = vmatprep.subr.bf16.mxu0 0
      %1277 = vmatpush1.bf16.msra.mxu0 0
      %1278 = vmatprep.subr.bf16.mxu0 0
      %1279 = vmatpush1.bf16.msra.mxu0 0
      %1280 = vmatprep.subr.bf16.mxu0 0
      %1281 = vmatpush1.bf16.msra.mxu0 0
      %1282 = vmatprep.subr.bf16.mxu0 0
      %1283 = vmatpush1.bf16.msra.mxu0 0
      %1284 = vmatprep.subr.bf16.mxu0 0
      %1285 = vmatpush1.bf16.msra.mxu0 0
      %1286 = vmatprep.mubr.bf16.mxu0 0
      %1287 = vmatmul.mubr.bf16.gmra.mrb[0].mxu0 %v1227
      %v1288 = vpop.f32.mrb[0].mxu0
      %v1289 = vadd.f32 %v1200, %v1288
      %v1290 = vpop.f32.mrb[0].mxu0
      %v1291 = vpop.f32.mrb[0].mxu0
      %v1292 = vadd.f32 %v1200, %v1291
      %v1293 = vpop.f32.mrb[0].mxu0
      %1294 = vmatprep.mubr.bf16.mxu0 0
      %1295 = vmatmul.mubr.bf16.gmra.mrb[0].mxu0 %v1230
      %v1296 = vpop.f32.mrb[0].mxu0
      %v1297 = vadd.f32 %v1200, %v1296
      %v1298 = vpop.f32.mrb[0].mxu0
      %v1299 = vpop.f32.mrb[0].mxu0
      %v1300 = vadd.f32 %v1200, %v1299
      %v1301 = vpop.f32.mrb[0].mxu0
      %1302 = vmatprep.mubr.bf16.mxu0 0
      %1303 = vmatmul.mubr.bf16.gmra.mrb[0].mxu0 %v1233
      %v1304 = vpop.f32.mrb[0].mxu0
      %v1305 = vadd.f32 %v1200, %v1304
      %v1306 = vpop.f32.mrb[0].mxu0
      %v1307 = vpop.f32.mrb[0].mxu0
      %v1308 = vadd.f32 %v1200, %v1307
      %v1309 = vpop.f32.mrb[0].mxu0
      %1310 = vmatprep.mubr.bf16.mxu0 0
      %1311 = vmatmul.mubr.bf16.gmra.mrb[0].mxu0 %v1236
      %v1312 = vpop.f32.mrb[0].mxu0
      %v1313 = vadd.f32 %v1200, %v1312
      %v1314 = vpop.f32.mrb[0].mxu0
      %v1315 = vpop.f32.mrb[0].mxu0
      %v1316 = vadd.f32 %v1200, %v1315
      %v1317 = vpop.f32.mrb[0].mxu0
      %1318 = vmatprep.mubr.bf16.mxu0 0
      %1319 = vmatmul.mubr.bf16.gmra.mrb[0].mxu0 %v1239
      %v1320 = vpop.f32.mrb[0].mxu0
      %v1321 = vadd.f32 %v1200, %v1320
      %v1322 = vpop.f32.mrb[0].mxu0
      %v1323 = vpop.f32.mrb[0].mxu0
      %v1324 = vadd.f32 %v1200, %v1323
      %v1325 = vpop.f32.mrb[0].mxu0
      %1326 = vmatprep.mubr.bf16.mxu0 0
      %1327 = vmatmul.mubr.bf16.gmra.mrb[0].mxu0 %v1242
      %v1328 = vpop.f32.mrb[0].mxu0
      %v1329 = vadd.f32 %v1200, %v1328
      %v1330 = vpop.f32.mrb[0].mxu0
      %v1331 = vpop.f32.mrb[0].mxu0
      %v1332 = vadd.f32 %v1200, %v1331
      %v1333 = vpop.f32.mrb[0].mxu0
      %1334 = vmatprep.mubr.bf16.mxu0 0
      %1335 = vmatmul.mubr.bf16.gmra.mrb[0].mxu0 %v1245
      %v1336 = vpop.f32.mrb[0].mxu0
      %v1337 = vadd.f32 %v1200, %v1336
      %v1338 = vpop.f32.mrb[0].mxu0
      %v1339 = vpop.f32.mrb[0].mxu0
      %v1340 = vadd.f32 %v1200, %v1339
      %v1341 = vpop.f32.mrb[0].mxu0
      %1342 = vmatprep.mubr.bf16.mxu0 0
      %1343 = vmatmul.mubr.bf16.gmra.mrb[0].mxu0 %v1248
      %v1344 = vpop.f32.mrb[0].mxu0
      %v1345 = vadd.f32 %v1200, %v1344
      %v1346 = vpop.f32.mrb[0].mxu0
      %v1347 = vpop.f32.mrb[0].mxu0
      %v1348 = vadd.f32 %v1200, %v1347
      %v1349 = vpop.f32.mrb[0].mxu0
      %1350 = vdwg.mxu0
      %v1351 = vmax.f32 %v1289, 0.0
      %v1352 = vmax.f32 %v1292, 0.0
      %v1353 = vmax.f32 %v1297, 0.0
      %v1354 = vmax.f32 %v1300, 0.0
      %v1355 = vmax.f32 %v1305, 0.0
      %v1356 = vmax.f32 %v1308, 0.0
      %v1357 = vmax.f32 %v1313, 0.0
      %v1358 = vmax.f32 %v1316, 0.0
      %v1359 = vmax.f32 %v1321, 0.0
      %v1360 = vmax.f32 %v1324, 0.0
      %v1361 = vmax.f32 %v1329, 0.0
      %v1362 = vmax.f32 %v1332, 0.0
      %v1363 = vmax.f32 %v1337, 0.0
      %v1364 = vmax.f32 %v1340, 0.0
      %v1365 = vmax.f32 %v1345, 0.0
      %v1366 = vmax.f32 %v1348, 0.0
      %v1367 = vpack.c.bf16 %v1352, %v1351
      %v1368 = vpack.c.bf16 %v1354, %v1353
      %v1369 = vpack.c.bf16 %v1356, %v1355
      %v1370 = vpack.c.bf16 %v1358, %v1357
      %v1371 = vpack.c.bf16 %v1360, %v1359
      %v1372 = vpack.c.bf16 %v1362, %v1361
      %v1373 = vpack.c.bf16 %v1364, %v1363
      %v1374 = vpack.c.bf16 %v1366, %v1365
      %v1375 = vld [vmem:[%s6] sm:$0xf]
      %v1377 = vsel %vm1152, %v1186, 0
      %v1380 = vsel %vm1152, %v1187, 0
      %v1383 = vsel %vm1152, %v1188, 0
      %v1386 = vsel %vm1152, %v1189, 0
      %v1389 = vsel %vm1152, %v1190, 0
      %v1392 = vsel %vm1152, %v1191, 0
      %v1395 = vsel %vm1152, %v1192, 0
      %v1398 = vsel %vm1152, %v1193, 0
      %vm1400 = vcmask 1043456
      %v1402 = vsel %vm1400, %v1375, 0
      %1404 = vmatprep.subr.bf16.mxu0 0
      %1405 = vmatpush1.bf16.msra.mxu0 %v1402
      %1406 = vmatprep.subr.bf16.mxu0 0
      %1407 = vmatpush1.bf16.msra.mxu0 0
      %1408 = vmatprep.subr.bf16.mxu0 0
      %1409 = vmatpush1.bf16.msra.mxu0 0
      %1410 = vmatprep.subr.bf16.mxu0 0
      %1411 = vmatpush1.bf16.msra.mxu0 0
      %1412 = vmatprep.subr.bf16.mxu0 0
      %1413 = vmatpush1.bf16.msra.mxu0 0
      %1414 = vmatprep.subr.bf16.mxu0 0
      %1415 = vmatpush1.bf16.msra.mxu0 0
      %1416 = vmatprep.subr.bf16.mxu0 0
      %1417 = vmatpush1.bf16.msra.mxu0 0
      %1418 = vmatprep.subr.bf16.mxu0 0
      %1419 = vmatpush1.bf16.msra.mxu0 0
      %1420 = vmatprep.subr.bf16.mxu0 0
      %1421 = vmatpush1.bf16.msra.mxu0 0
      %1422 = vmatprep.subr.bf16.mxu0 0
      %1423 = vmatpush1.bf16.msra.mxu0 0
      %1424 = vmatprep.subr.bf16.mxu0 0
      %1425 = vmatpush1.bf16.msra.mxu0 0
      %1426 = vmatprep.subr.bf16.mxu0 0
      %1427 = vmatpush1.bf16.msra.mxu0 0
      %1428 = vmatprep.subr.bf16.mxu0 0
      %1429 = vmatpush1.bf16.msra.mxu0 0
      %1430 = vmatprep.subr.bf16.mxu0 0
      %1431 = vmatpush1.bf16.msra.mxu0 0
      %1432 = vmatprep.subr.bf16.mxu0 0
      %1433 = vmatpush1.bf16.msra.mxu0 0
      %1434 = vmatprep.subr.bf16.mxu0 0
      %1435 = vmatpush1.bf16.msra.mxu0 0
      %1436 = vmatprep.mubr.bf16.mxu0 0
      %1437 = vmatmul.mubr.bf16.gmra.mrb[0].mxu0 %v1377
      %v1438 = vpop.f32.mrb[0].mxu0
      %v1439 = vadd.f32 %v1200, %v1438
      %v1440 = vpop.f32.mrb[0].mxu0
      %v1441 = vpop.f32.mrb[0].mxu0
      %v1442 = vadd.f32 %v1200, %v1441
      %v1443 = vpop.f32.mrb[0].mxu0
      %1444 = vmatprep.mubr.bf16.mxu0 0
      %1445 = vmatmul.mubr.bf16.gmra.mrb[0].mxu0 %v1380
      %v1446 = vpop.f32.mrb[0].mxu0
      %v1447 = vadd.f32 %v1200, %v1446
      %v1448 = vpop.f32.mrb[0].mxu0
      %v1449 = vpop.f32.mrb[0].mxu0
      %v1450 = vadd.f32 %v1200, %v1449
      %v1451 = vpop.f32.mrb[0].mxu0
      %1452 = vmatprep.mubr.bf16.mxu0 0
      %1453 = vmatmul.mubr.bf16.gmra.mrb[0].mxu0 %v1383
      %v1454 = vpop.f32.mrb[0].mxu0
      %v1455 = vadd.f32 %v1200, %v1454
      %v1456 = vpop.f32.mrb[0].mxu0
      %v1457 = vpop.f32.mrb[0].mxu0
      %v1458 = vadd.f32 %v1200, %v1457
      %v1459 = vpop.f32.mrb[0].mxu0
      %1460 = vmatprep.mubr.bf16.mxu0 0
      %1461 = vmatmul.mubr.bf16.gmra.mrb[0].mxu0 %v1386
      %v1462 = vpop.f32.mrb[0].mxu0
      %v1463 = vadd.f32 %v1200, %v1462
      %v1464 = vpop.f32.mrb[0].mxu0
      %v1465 = vpop.f32.mrb[0].mxu0
      %v1466 = vadd.f32 %v1200, %v1465
      %v1467 = vpop.f32.mrb[0].mxu0
      %1468 = vmatprep.mubr.bf16.mxu0 0
      %1469 = vmatmul.mubr.bf16.gmra.mrb[0].mxu0 %v1389
      %v1470 = vpop.f32.mrb[0].mxu0
      %v1471 = vadd.f32 %v1200, %v1470
      %v1472 = vpop.f32.mrb[0].mxu0
      %v1473 = vpop.f32.mrb[0].mxu0
      %v1474 = vadd.f32 %v1200, %v1473
      %v1475 = vpop.f32.mrb[0].mxu0
      %1476 = vmatprep.mubr.bf16.mxu0 0
      %1477 = vmatmul.mubr.bf16.gmra.mrb[0].mxu0 %v1392
      %v1478 = vpop.f32.mrb[0].mxu0
      %v1479 = vadd.f32 %v1200, %v1478
      %v1480 = vpop.f32.mrb[0].mxu0
      %v1481 = vpop.f32.mrb[0].mxu0
      %v1482 = vadd.f32 %v1200, %v1481
      %v1483 = vpop.f32.mrb[0].mxu0
      %1484 = vmatprep.mubr.bf16.mxu0 0
      %1485 = vmatmul.mubr.bf16.gmra.mrb[0].mxu0 %v1395
      %v1486 = vpop.f32.mrb[0].mxu0
      %v1487 = vadd.f32 %v1200, %v1486
      %v1488 = vpop.f32.mrb[0].mxu0
      %v1489 = vpop.f32.mrb[0].mxu0
      %v1490 = vadd.f32 %v1200, %v1489
      %v1491 = vpop.f32.mrb[0].mxu0
      %1492 = vmatprep.mubr.bf16.mxu0 0
      %1493 = vmatmul.mubr.bf16.gmra.mrb[0].mxu0 %v1398
      %v1494 = vpop.f32.mrb[0].mxu0
      %v1495 = vadd.f32 %v1200, %v1494
      %v1496 = vpop.f32.mrb[0].mxu0
      %v1497 = vpop.f32.mrb[0].mxu0
      %v1498 = vadd.f32 %v1200, %v1497
      %v1499 = vpop.f32.mrb[0].mxu0
      %1500 = vdwg.mxu0
      %v1501 = vmax.f32 %v1439, 0.0
      %v1502 = vmax.f32 %v1442, 0.0
      %v1503 = vmax.f32 %v1447, 0.0
      %v1504 = vmax.f32 %v1450, 0.0
      %v1505 = vmax.f32 %v1455, 0.0
      %v1506 = vmax.f32 %v1458, 0.0
      %v1507 = vmax.f32 %v1463, 0.0
      %v1508 = vmax.f32 %v1466, 0.0
      %v1509 = vmax.f32 %v1471, 0.0
      %v1510 = vmax.f32 %v1474, 0.0
      %v1511 = vmax.f32 %v1479, 0.0
      %v1512 = vmax.f32 %v1482, 0.0
      %v1513 = vmax.f32 %v1487, 0.0
      %v1514 = vmax.f32 %v1490, 0.0
      %v1515 = vmax.f32 %v1495, 0.0
      %v1516 = vmax.f32 %v1498, 0.0
      %v1517 = vpack.c.bf16 %v1502, %v1501
      %v1518 = vpack.c.bf16 %v1504, %v1503
      %v1519 = vpack.c.bf16 %v1506, %v1505
      %v1520 = vpack.c.bf16 %v1508, %v1507
      %v1521 = vpack.c.bf16 %v1510, %v1509
      %v1522 = vpack.c.bf16 %v1512, %v1511
      %v1523 = vpack.c.bf16 %v1514, %v1513
      %v1524 = vpack.c.bf16 %v1516, %v1515
      %v1525 = vld [vmem:[%s7] sm:$0xf]
      %v1526 = vsel %vm1152, %v1211, 0
      %v1528 = vsel %vm1152, %v1213, 0
      %v1530 = vsel %vm1152, %v1215, 0
      %v1532 = vsel %vm1152, %v1217, 0
      %v1534 = vsel %vm1152, %v1219, 0
      %v1536 = vsel %vm1152, %v1221, 0
      %v1538 = vsel %vm1152, %v1223, 0
      %v1540 = vsel %vm1152, %v1225, 0
      %v1543 = vsel %vm1400, %v1525, 0
      %1545 = vmatprep.subr.bf16.mxu0 0
      %1546 = vmatpush1.bf16.msra.mxu0 %v1543
      %1547 = vmatprep.subr.bf16.mxu0 0
      %1548 = vmatpush1.bf16.msra.mxu0 0
      %1549 = vmatprep.subr.bf16.mxu0 0
      %1550 = vmatpush1.bf16.msra.mxu0 0
      %1551 = vmatprep.subr.bf16.mxu0 0
      %1552 = vmatpush1.bf16.msra.mxu0 0
      %1553 = vmatprep.subr.bf16.mxu0 0
      %1554 = vmatpush1.bf16.msra.mxu0 0
      %1555 = vmatprep.subr.bf16.mxu0 0
      %1556 = vmatpush1.bf16.msra.mxu0 0
      %1557 = vmatprep.subr.bf16.mxu0 0
      %1558 = vmatpush1.bf16.msra.mxu0 0
      %1559 = vmatprep.subr.bf16.mxu0 0
      %1560 = vmatpush1.bf16.msra.mxu0 0
      %1561 = vmatprep.subr.bf16.mxu0 0
      %1562 = vmatpush1.bf16.msra.mxu0 0
      %1563 = vmatprep.subr.bf16.mxu0 0
      %1564 = vmatpush1.bf16.msra.mxu0 0
      %1565 = vmatprep.subr.bf16.mxu0 0
      %1566 = vmatpush1.bf16.msra.mxu0 0
      %1567 = vmatprep.subr.bf16.mxu0 0
      %1568 = vmatpush1.bf16.msra.mxu0 0
      %1569 = vmatprep.subr.bf16.mxu0 0
      %1570 = vmatpush1.bf16.msra.mxu0 0
      %1571 = vmatprep.subr.bf16.mxu0 0
      %1572 = vmatpush1.bf16.msra.mxu0 0
      %1573 = vmatprep.subr.bf16.mxu0 0
      %1574 = vmatpush1.bf16.msra.mxu0 0
      %1575 = vmatprep.subr.bf16.mxu0 0
      %1576 = vmatpush1.bf16.msra.mxu0 0
      %1577 = vmatprep.mubr.bf16.mxu0 0
      %1578 = vmatmul.mubr.bf16.gmra.mrb[0].mxu0 %v1526
      %v1579 = vpop.f32.mrb[0].mxu0
      %v1580 = vadd.f32 %v1200, %v1579
      %v1581 = vpop.f32.mrb[0].mxu0
      %v1582 = vpop.f32.mrb[0].mxu0
      %v1583 = vadd.f32 %v1200, %v1582
      %v1584 = vpop.f32.mrb[0].mxu0
      %1585 = vmatprep.mubr.bf16.mxu0 0
      %1586 = vmatmul.mubr.bf16.gmra.mrb[0].mxu0 %v1528
      %v1587 = vpop.f32.mrb[0].mxu0
      %v1588 = vadd.f32 %v1200, %v1587
      %v1589 = vpop.f32.mrb[0].mxu0
      %v1590 = vpop.f32.mrb[0].mxu0
      %v1591 = vadd.f32 %v1200, %v1590
      %v1592 = vpop.f32.mrb[0].mxu0
      %1593 = vmatprep.mubr.bf16.mxu0 0
      %1594 = vmatmul.mubr.bf16.gmra.mrb[0].mxu0 %v1530
      %v1595 = vpop.f32.mrb[0].mxu0
      %v1596 = vadd.f32 %v1200, %v1595
      %v1597 = vpop.f32.mrb[0].mxu0
      %v1598 = vpop.f32.mrb[0].mxu0
      %v1599 = vadd.f32 %v1200, %v1598
      %v1600 = vpop.f32.mrb[0].mxu0
      %1601 = vmatprep.mubr.bf16.mxu0 0
      %1602 = vmatmul.mubr.bf16.gmra.mrb[0].mxu0 %v1532
      %v1603 = vpop.f32.mrb[0].mxu0
      %v1604 = vadd.f32 %v1200, %v1603
      %v1605 = vpop.f32.mrb[0].mxu0
      %v1606 = vpop.f32.mrb[0].mxu0
      %v1607 = vadd.f32 %v1200, %v1606
      %v1608 = vpop.f32.mrb[0].mxu0
      %1609 = vmatprep.mubr.bf16.mxu0 0
      %1610 = vmatmul.mubr.bf16.gmra.mrb[0].mxu0 %v1534
      %v1611 = vpop.f32.mrb[0].mxu0
      %v1612 = vadd.f32 %v1200, %v1611
      %v1613 = vpop.f32.mrb[0].mxu0
      %v1614 = vpop.f32.mrb[0].mxu0
      %v1615 = vadd.f32 %v1200, %v1614
      %v1616 = vpop.f32.mrb[0].mxu0
      %1617 = vmatprep.mubr.bf16.mxu0 0
      %1618 = vmatmul.mubr.bf16.gmra.mrb[0].mxu0 %v1536
      %v1619 = vpop.f32.mrb[0].mxu0
      %v1620 = vadd.f32 %v1200, %v1619
      %v1621 = vpop.f32.mrb[0].mxu0
      %v1622 = vpop.f32.mrb[0].mxu0
      %v1623 = vadd.f32 %v1200, %v1622
      %v1624 = vpop.f32.mrb[0].mxu0
      %1625 = vmatprep.mubr.bf16.mxu0 0
      %1626 = vmatmul.mubr.bf16.gmra.mrb[0].mxu0 %v1538
      %v1627 = vpop.f32.mrb[0].mxu0
      %v1628 = vadd.f32 %v1200, %v1627
      %v1629 = vpop.f32.mrb[0].mxu0
      %v1630 = vpop.f32.mrb[0].mxu0
      %v1631 = vadd.f32 %v1200, %v1630
      %v1632 = vpop.f32.mrb[0].mxu0
      %1633 = vmatprep.mubr.bf16.mxu0 0
      %1634 = vmatmul.mubr.bf16.gmra.mrb[0].mxu0 %v1540
      %v1635 = vpop.f32.mrb[0].mxu0
      %v1636 = vadd.f32 %v1200, %v1635
      %v1637 = vpop.f32.mrb[0].mxu0
      %v1638 = vpop.f32.mrb[0].mxu0
      %v1639 = vadd.f32 %v1200, %v1638
      %v1640 = vpop.f32.mrb[0].mxu0
      %1641 = vdwg.mxu0
      %v1642 = vmax.f32 %v1580, 0.0
      %v1643 = vmax.f32 %v1583, 0.0
      %v1644 = vmax.f32 %v1588, 0.0
      %v1645 = vmax.f32 %v1591, 0.0
      %v1646 = vmax.f32 %v1596, 0.0
      %v1647 = vmax.f32 %v1599, 0.0
      %v1648 = vmax.f32 %v1604, 0.0
      %v1649 = vmax.f32 %v1607, 0.0
      %v1650 = vmax.f32 %v1612, 0.0
      %v1651 = vmax.f32 %v1615, 0.0
      %v1652 = vmax.f32 %v1620, 0.0
      %v1653 = vmax.f32 %v1623, 0.0
      %v1654 = vmax.f32 %v1628, 0.0
      %v1655 = vmax.f32 %v1631, 0.0
      %v1656 = vmax.f32 %v1636, 0.0
      %v1657 = vmax.f32 %v1639, 0.0
      %v1658 = vpack.c.bf16 %v1643, %v1642
      %v1659 = vpack.c.bf16 %v1645, %v1644
      %v1660 = vpack.c.bf16 %v1647, %v1646
      %v1661 = vpack.c.bf16 %v1649, %v1648
      %v1662 = vpack.c.bf16 %v1651, %v1650
      %v1663 = vpack.c.bf16 %v1653, %v1652
      %v1664 = vpack.c.bf16 %v1655, %v1654
      %v1665 = vpack.c.bf16 %v1657, %v1656
      %v1666 = vld [vmem:[%s8] sm:$0xf]
      %v1667 = vld [vmem:[%s8 + $0x4] sm:$0xf]
      %v1670 = vunpack.c.l.b16 %v1666
      %v1671 = vunpack.c.l.b16 %v1667
      %v1672 = vpack.c.b16 %v1671, %v1670
      %v1674 = vsel %vm593, %v1186, 0
      %v1676 = vsel %vm593, %v1187, 0
      %v1678 = vsel %vm593, %v1188, 0
      %v1680 = vsel %vm593, %v1189, 0
      %v1682 = vsel %vm593, %v1190, 0
      %v1684 = vsel %vm593, %v1191, 0
      %v1686 = vsel %vm593, %v1192, 0
      %v1688 = vsel %vm593, %v1193, 0
      %1690 = vmatprep.subr.bf16.mxu0 0
      %1691 = vmatpush1.bf16.msra.mxu0 %v1672
      %1692 = vmatprep.subr.bf16.mxu0 0
      %1693 = vmatpush1.bf16.msra.mxu0 0
      %1694 = vmatprep.subr.bf16.mxu0 0
      %1695 = vmatpush1.bf16.msra.mxu0 0
      %1696 = vmatprep.subr.bf16.mxu0 0
      %1697 = vmatpush1.bf16.msra.mxu0 0
      %1698 = vmatprep.subr.bf16.mxu0 0
      %1699 = vmatpush1.bf16.msra.mxu0 0
      %1700 = vmatprep.subr.bf16.mxu0 0
      %1701 = vmatpush1.bf16.msra.mxu0 0
      %1702 = vmatprep.subr.bf16.mxu0 0
      %1703 = vmatpush1.bf16.msra.mxu0 0
      %1704 = vmatprep.subr.bf16.mxu0 0
      %1705 = vmatpush1.bf16.msra.mxu0 0
      %1706 = vmatprep.subr.bf16.mxu0 0
      %1707 = vmatpush1.bf16.msra.mxu0 0
      %1708 = vmatprep.subr.bf16.mxu0 0
      %1709 = vmatpush1.bf16.msra.mxu0 0
      %1710 = vmatprep.subr.bf16.mxu0 0
      %1711 = vmatpush1.bf16.msra.mxu0 0
      %1712 = vmatprep.subr.bf16.mxu0 0
      %1713 = vmatpush1.bf16.msra.mxu0 0
      %1714 = vmatprep.subr.bf16.mxu0 0
      %1715 = vmatpush1.bf16.msra.mxu0 0
      %1716 = vmatprep.subr.bf16.mxu0 0
      %1717 = vmatpush1.bf16.msra.mxu0 0
      %1718 = vmatprep.subr.bf16.mxu0 0
      %1719 = vmatpush1.bf16.msra.mxu0 0
      %1720 = vmatprep.subr.bf16.mxu0 0
      %1721 = vmatpush1.bf16.msra.mxu0 0
      %1722 = vmatprep.mubr.bf16.mxu0 0
      %1723 = vmatmul.mubr.bf16.gmra.mrb[0].mxu0 %v1674
      %v1724 = vpop.f32.mrb[0].mxu0
      %v1725 = vadd.f32 %v1200, %v1724
      %v1726 = vpop.f32.mrb[0].mxu0
      %v1727 = vpop.f32.mrb[0].mxu0
      %v1728 = vadd.f32 %v1200, %v1727
      %v1729 = vpop.f32.mrb[0].mxu0
      %1730 = vmatprep.mubr.bf16.mxu0 0
      %1731 = vmatmul.mubr.bf16.gmra.mrb[0].mxu0 %v1676
      %v1732 = vpop.f32.mrb[0].mxu0
      %v1733 = vadd.f32 %v1200, %v1732
      %v1734 = vpop.f32.mrb[0].mxu0
      %v1735 = vpop.f32.mrb[0].mxu0
      %v1736 = vadd.f32 %v1200, %v1735
      %v1737 = vpop.f32.mrb[0].mxu0
      %1738 = vmatprep.mubr.bf16.mxu0 0
      %1739 = vmatmul.mubr.bf16.gmra.mrb[0].mxu0 %v1678
      %v1740 = vpop.f32.mrb[0].mxu0
      %v1741 = vadd.f32 %v1200, %v1740
      %v1742 = vpop.f32.mrb[0].mxu0
      %v1743 = vpop.f32.mrb[0].mxu0
      %v1744 = vadd.f32 %v1200, %v1743
      %v1745 = vpop.f32.mrb[0].mxu0
      %1746 = vmatprep.mubr.bf16.mxu0 0
      %1747 = vmatmul.mubr.bf16.gmra.mrb[0].mxu0 %v1680
      %v1748 = vpop.f32.mrb[0].mxu0
      %v1749 = vadd.f32 %v1200, %v1748
      %v1750 = vpop.f32.mrb[0].mxu0
      %v1751 = vpop.f32.mrb[0].mxu0
      %v1752 = vadd.f32 %v1200, %v1751
      %v1753 = vpop.f32.mrb[0].mxu0
      %1754 = vmatprep.mubr.bf16.mxu0 0
      %1755 = vmatmul.mubr.bf16.gmra.mrb[0].mxu0 %v1682
      %v1756 = vpop.f32.mrb[0].mxu0
      %v1757 = vadd.f32 %v1200, %v1756
      %v1758 = vpop.f32.mrb[0].mxu0
      %v1759 = vpop.f32.mrb[0].mxu0
      %v1760 = vadd.f32 %v1200, %v1759
      %v1761 = vpop.f32.mrb[0].mxu0
      %1762 = vmatprep.mubr.bf16.mxu0 0
      %1763 = vmatmul.mubr.bf16.gmra.mrb[0].mxu0 %v1684
      %v1764 = vpop.f32.mrb[0].mxu0
      %v1765 = vadd.f32 %v1200, %v1764
      %v1766 = vpop.f32.mrb[0].mxu0
      %v1767 = vpop.f32.mrb[0].mxu0
      %v1768 = vadd.f32 %v1200, %v1767
      %v1769 = vpop.f32.mrb[0].mxu0
      %1770 = vmatprep.mubr.bf16.mxu0 0
      %1771 = vmatmul.mubr.bf16.gmra.mrb[0].mxu0 %v1686
      %v1772 = vpop.f32.mrb[0].mxu0
      %v1773 = vadd.f32 %v1200, %v1772
      %v1774 = vpop.f32.mrb[0].mxu0
      %v1775 = vpop.f32.mrb[0].mxu0
      %v1776 = vadd.f32 %v1200, %v1775
      %v1777 = vpop.f32.mrb[0].mxu0
      %1778 = vmatprep.mubr.bf16.mxu0 0
      %1779 = vmatmul.mubr.bf16.gmra.mrb[0].mxu0 %v1688
      %v1780 = vpop.f32.mrb[0].mxu0
      %v1781 = vadd.f32 %v1200, %v1780
      %v1782 = vpop.f32.mrb[0].mxu0
      %v1783 = vpop.f32.mrb[0].mxu0
      %v1784 = vadd.f32 %v1200, %v1783
      %v1785 = vpop.f32.mrb[0].mxu0
      %1786 = vdwg.mxu0
      %v1787 = vmax.f32 %v1725, 0.0
      %v1788 = vmax.f32 %v1728, 0.0
      %v1789 = vmax.f32 %v1733, 0.0
      %v1790 = vmax.f32 %v1736, 0.0
      %v1791 = vmax.f32 %v1741, 0.0
      %v1792 = vmax.f32 %v1744, 0.0
      %v1793 = vmax.f32 %v1749, 0.0
      %v1794 = vmax.f32 %v1752, 0.0
      %v1795 = vmax.f32 %v1757, 0.0
      %v1796 = vmax.f32 %v1760, 0.0
      %v1797 = vmax.f32 %v1765, 0.0
      %v1798 = vmax.f32 %v1768, 0.0
      %v1799 = vmax.f32 %v1773, 0.0
      %v1800 = vmax.f32 %v1776, 0.0
      %v1801 = vmax.f32 %v1781, 0.0
      %v1802 = vmax.f32 %v1784, 0.0
      %v1803 = vpack.c.bf16 %v1788, %v1787
      %v1804 = vpack.c.bf16 %v1790, %v1789
      %v1805 = vpack.c.bf16 %v1792, %v1791
      %v1806 = vpack.c.bf16 %v1794, %v1793
      %v1807 = vpack.c.bf16 %v1796, %v1795
      %v1808 = vpack.c.bf16 %v1798, %v1797
      %v1809 = vpack.c.bf16 %v1800, %v1799
      %v1810 = vpack.c.bf16 %v1802, %v1801
      %v1811 = vld [vmem:[%s10] sm:$0x3]
      %v1812 = vld [vmem:[%s11] sm:$0x1]
      %v1814 = vlaneseq
      %v1815 = vshrl.u32 %v1814, 7
      %v1816 = vsub.s32 0, %v1815
      %v1817 = vrot.slane %v1812, %v1816
      %v1820 = vsel %vm1135, %v1367, 0
      %v1823 = vsel %vm1135, %v1368, 0
      %v1826 = vsel %vm1135, %v1369, 0
      %v1829 = vsel %vm1135, %v1370, 0
      %v1832 = vsel %vm1135, %v1371, 0
      %v1835 = vsel %vm1135, %v1372, 0
      %v1838 = vsel %vm1135, %v1373, 0
      %v1841 = vsel %vm1135, %v1374, 0
      %v1844 = vsel %vm1250, %v1811, 0
      %1846 = vmatprep.subr.bf16.mxu0 0
      %1847 = vmatpush1.bf16.msra.mxu0 %v1844
      %1848 = vmatprep.subr.bf16.mxu0 0
      %1849 = vmatpush1.bf16.msra.mxu0 0
      %1850 = vmatprep.subr.bf16.mxu0 0
      %1851 = vmatpush1.bf16.msra.mxu0 0
      %1852 = vmatprep.subr.bf16.mxu0 0
      %1853 = vmatpush1.bf16.msra.mxu0 0
      %1854 = vmatprep.subr.bf16.mxu0 0
      %1855 = vmatpush1.bf16.msra.mxu0 0
      %1856 = vmatprep.subr.bf16.mxu0 0
      %1857 = vmatpush1.bf16.msra.mxu0 0
      %1858 = vmatprep.subr.bf16.mxu0 0
      %1859 = vmatpush1.bf16.msra.mxu0 0
      %1860 = vmatprep.subr.bf16.mxu0 0
      %1861 = vmatpush1.bf16.msra.mxu0 0
      %1862 = vmatprep.subr.bf16.mxu0 0
      %1863 = vmatpush1.bf16.msra.mxu0 0
      %1864 = vmatprep.subr.bf16.mxu0 0
      %1865 = vmatpush1.bf16.msra.mxu0 0
      %1866 = vmatprep.subr.bf16.mxu0 0
      %1867 = vmatpush1.bf16.msra.mxu0 0
      %1868 = vmatprep.subr.bf16.mxu0 0
      %1869 = vmatpush1.bf16.msra.mxu0 0
      %1870 = vmatprep.subr.bf16.mxu0 0
      %1871 = vmatpush1.bf16.msra.mxu0 0
      %1872 = vmatprep.subr.bf16.mxu0 0
      %1873 = vmatpush1.bf16.msra.mxu0 0
      %1874 = vmatprep.subr.bf16.mxu0 0
      %1875 = vmatpush1.bf16.msra.mxu0 0
      %1876 = vmatprep.subr.bf16.mxu0 0
      %1877 = vmatpush1.bf16.msra.mxu0 0
      %1878 = vmatprep.mubr.bf16.mxu0 0
      %1879 = vmatmul.mubr.bf16.gmra.mrb[0].mxu0 %v1820
      %v1880 = vpop.f32.mrb[0].mxu0
      %v1881 = vadd.f32 %v1817, %v1880
      %v1882 = vpop.f32.mrb[0].mxu0
      %v1883 = vpop.f32.mrb[0].mxu0
      %v1884 = vadd.f32 %v1817, %v1883
      %v1885 = vpop.f32.mrb[0].mxu0
      %1886 = vmatprep.mubr.bf16.mxu0 0
      %1887 = vmatmul.mubr.bf16.gmra.mrb[0].mxu0 %v1823
      %v1888 = vpop.f32.mrb[0].mxu0
      %v1889 = vadd.f32 %v1817, %v1888
      %v1890 = vpop.f32.mrb[0].mxu0
      %v1891 = vpop.f32.mrb[0].mxu0
      %v1892 = vadd.f32 %v1817, %v1891
      %v1893 = vpop.f32.mrb[0].mxu0
      %1894 = vmatprep.mubr.bf16.mxu0 0
      %1895 = vmatmul.mubr.bf16.gmra.mrb[0].mxu0 %v1826
      %v1896 = vpop.f32.mrb[0].mxu0
      %v1897 = vadd.f32 %v1817, %v1896
      %v1898 = vpop.f32.mrb[0].mxu0
      %v1899 = vpop.f32.mrb[0].mxu0
      %v1900 = vadd.f32 %v1817, %v1899
      %v1901 = vpop.f32.mrb[0].mxu0
      %1902 = vmatprep.mubr.bf16.mxu0 0
      %1903 = vmatmul.mubr.bf16.gmra.mrb[0].mxu0 %v1829
      %v1904 = vpop.f32.mrb[0].mxu0
      %v1905 = vadd.f32 %v1817, %v1904
      %v1906 = vpop.f32.mrb[0].mxu0
      %v1907 = vpop.f32.mrb[0].mxu0
      %v1908 = vadd.f32 %v1817, %v1907
      %v1909 = vpop.f32.mrb[0].mxu0
      %1910 = vmatprep.mubr.bf16.mxu0 0
      %1911 = vmatmul.mubr.bf16.gmra.mrb[0].mxu0 %v1832
      %v1912 = vpop.f32.mrb[0].mxu0
      %v1913 = vadd.f32 %v1817, %v1912
      %v1914 = vpop.f32.mrb[0].mxu0
      %v1915 = vpop.f32.mrb[0].mxu0
      %v1916 = vadd.f32 %v1817, %v1915
      %v1917 = vpop.f32.mrb[0].mxu0
      %1918 = vmatprep.mubr.bf16.mxu0 0
      %1919 = vmatmul.mubr.bf16.gmra.mrb[0].mxu0 %v1835
      %v1920 = vpop.f32.mrb[0].mxu0
      %v1921 = vadd.f32 %v1817, %v1920
      %v1922 = vpop.f32.mrb[0].mxu0
      %v1923 = vpop.f32.mrb[0].mxu0
      %v1924 = vadd.f32 %v1817, %v1923
      %v1925 = vpop.f32.mrb[0].mxu0
      %1926 = vmatprep.mubr.bf16.mxu0 0
      %1927 = vmatmul.mubr.bf16.gmra.mrb[0].mxu0 %v1838
      %v1928 = vpop.f32.mrb[0].mxu0
      %v1929 = vadd.f32 %v1817, %v1928
      %v1930 = vpop.f32.mrb[0].mxu0
      %v1931 = vpop.f32.mrb[0].mxu0
      %v1932 = vadd.f32 %v1817, %v1931
      %v1933 = vpop.f32.mrb[0].mxu0
      %1934 = vmatprep.mubr.bf16.mxu0 0
      %1935 = vmatmul.mubr.bf16.gmra.mrb[0].mxu0 %v1841
      %v1936 = vpop.f32.mrb[0].mxu0
      %v1937 = vadd.f32 %v1817, %v1936
      %v1938 = vpop.f32.mrb[0].mxu0
      %v1939 = vpop.f32.mrb[0].mxu0
      %v1940 = vadd.f32 %v1817, %v1939
      %v1941 = vpop.f32.mrb[0].mxu0
      %1942 = vdwg.mxu0
      %v1943 = vmax.f32 %v1881, 0.0
      %v1944 = vmax.f32 %v1884, 0.0
      %v1945 = vmax.f32 %v1889, 0.0
      %v1946 = vmax.f32 %v1892, 0.0
      %v1947 = vmax.f32 %v1897, 0.0
      %v1948 = vmax.f32 %v1900, 0.0
      %v1949 = vmax.f32 %v1905, 0.0
      %v1950 = vmax.f32 %v1908, 0.0
      %v1951 = vmax.f32 %v1913, 0.0
      %v1952 = vmax.f32 %v1916, 0.0
      %v1953 = vmax.f32 %v1921, 0.0
      %v1954 = vmax.f32 %v1924, 0.0
      %v1955 = vmax.f32 %v1929, 0.0
      %v1956 = vmax.f32 %v1932, 0.0
      %v1957 = vmax.f32 %v1937, 0.0
      %v1958 = vmax.f32 %v1940, 0.0
      %v1960 = vsel %vm1135, %v1517, 0
      %v1963 = vsel %vm1135, %v1518, 0
      %v1966 = vsel %vm1135, %v1519, 0
      %v1969 = vsel %vm1135, %v1520, 0
      %v1972 = vsel %vm1135, %v1521, 0
      %v1975 = vsel %vm1135, %v1522, 0
      %v1978 = vsel %vm1135, %v1523, 0
      %v1981 = vsel %vm1135, %v1524, 0
      %1983 = vmatprep.subr.bf16.mxu0 0
      %1984 = vmatpush1.bf16.msra.mxu0 %v1844
      %1985 = vmatprep.subr.bf16.mxu0 0
      %1986 = vmatpush1.bf16.msra.mxu0 0
      %1987 = vmatprep.subr.bf16.mxu0 0
      %1988 = vmatpush1.bf16.msra.mxu0 0
      %1989 = vmatprep.subr.bf16.mxu0 0
      %1990 = vmatpush1.bf16.msra.mxu0 0
      %1991 = vmatprep.subr.bf16.mxu0 0
      %1992 = vmatpush1.bf16.msra.mxu0 0
      %1993 = vmatprep.subr.bf16.mxu0 0
      %1994 = vmatpush1.bf16.msra.mxu0 0
      %1995 = vmatprep.subr.bf16.mxu0 0
      %1996 = vmatpush1.bf16.msra.mxu0 0
      %1997 = vmatprep.subr.bf16.mxu0 0
      %1998 = vmatpush1.bf16.msra.mxu0 0
      %1999 = vmatprep.subr.bf16.mxu0 0
      %2000 = vmatpush1.bf16.msra.mxu0 0
      %2001 = vmatprep.subr.bf16.mxu0 0
      %2002 = vmatpush1.bf16.msra.mxu0 0
      %2003 = vmatprep.subr.bf16.mxu0 0
      %2004 = vmatpush1.bf16.msra.mxu0 0
      %2005 = vmatprep.subr.bf16.mxu0 0
      %2006 = vmatpush1.bf16.msra.mxu0 0
      %2007 = vmatprep.subr.bf16.mxu0 0
      %2008 = vmatpush1.bf16.msra.mxu0 0
      %2009 = vmatprep.subr.bf16.mxu0 0
      %2010 = vmatpush1.bf16.msra.mxu0 0
      %2011 = vmatprep.subr.bf16.mxu0 0
      %2012 = vmatpush1.bf16.msra.mxu0 0
      %2013 = vmatprep.subr.bf16.mxu0 0
      %2014 = vmatpush1.bf16.msra.mxu0 0
      %2015 = vmatprep.mubr.bf16.mxu0 0
      %2016 = vmatmul.mubr.bf16.gmra.mrb[0].mxu0 %v1960
      %v2017 = vpop.f32.mrb[0].mxu0
      %v2018 = vadd.f32 %v1817, %v2017
      %v2019 = vpop.f32.mrb[0].mxu0
      %v2020 = vpop.f32.mrb[0].mxu0
      %v2021 = vadd.f32 %v1817, %v2020
      %v2022 = vpop.f32.mrb[0].mxu0
      %2023 = vmatprep.mubr.bf16.mxu0 0
      %2024 = vmatmul.mubr.bf16.gmra.mrb[0].mxu0 %v1963
      %v2025 = vpop.f32.mrb[0].mxu0
      %v2026 = vadd.f32 %v1817, %v2025
      %v2027 = vpop.f32.mrb[0].mxu0
      %v2028 = vpop.f32.mrb[0].mxu0
      %v2029 = vadd.f32 %v1817, %v2028
      %v2030 = vpop.f32.mrb[0].mxu0
      %2031 = vmatprep.mubr.bf16.mxu0 0
      %2032 = vmatmul.mubr.bf16.gmra.mrb[0].mxu0 %v1966
      %v2033 = vpop.f32.mrb[0].mxu0
      %v2034 = vadd.f32 %v1817, %v2033
      %v2035 = vpop.f32.mrb[0].mxu0
      %v2036 = vpop.f32.mrb[0].mxu0
      %v2037 = vadd.f32 %v1817, %v2036
      %v2038 = vpop.f32.mrb[0].mxu0
      %2039 = vmatprep.mubr.bf16.mxu0 0
      %2040 = vmatmul.mubr.bf16.gmra.mrb[0].mxu0 %v1969
      %v2041 = vpop.f32.mrb[0].mxu0
      %v2042 = vadd.f32 %v1817, %v2041
      %v2043 = vpop.f32.mrb[0].mxu0
      %v2044 = vpop.f32.mrb[0].mxu0
      %v2045 = vadd.f32 %v1817, %v2044
      %v2046 = vpop.f32.mrb[0].mxu0
      %2047 = vmatprep.mubr.bf16.mxu0 0
      %2048 = vmatmul.mubr.bf16.gmra.mrb[0].mxu0 %v1972
      %v2049 = vpop.f32.mrb[0].mxu0
      %v2050 = vadd.f32 %v1817, %v2049
      %v2051 = vpop.f32.mrb[0].mxu0
      %v2052 = vpop.f32.mrb[0].mxu0
      %v2053 = vadd.f32 %v1817, %v2052
      %v2054 = vpop.f32.mrb[0].mxu0
      %2055 = vmatprep.mubr.bf16.mxu0 0
      %2056 = vmatmul.mubr.bf16.gmra.mrb[0].mxu0 %v1975
      %v2057 = vpop.f32.mrb[0].mxu0
      %v2058 = vadd.f32 %v1817, %v2057
      %v2059 = vpop.f32.mrb[0].mxu0
      %v2060 = vpop.f32.mrb[0].mxu0
      %v2061 = vadd.f32 %v1817, %v2060
      %v2062 = vpop.f32.mrb[0].mxu0
      %2063 = vmatprep.mubr.bf16.mxu0 0
      %2064 = vmatmul.mubr.bf16.gmra.mrb[0].mxu0 %v1978
      %v2065 = vpop.f32.mrb[0].mxu0
      %v2066 = vadd.f32 %v1817, %v2065
      %v2067 = vpop.f32.mrb[0].mxu0
      %v2068 = vpop.f32.mrb[0].mxu0
      %v2069 = vadd.f32 %v1817, %v2068
      %v2070 = vpop.f32.mrb[0].mxu0
      %2071 = vmatprep.mubr.bf16.mxu0 0
      %2072 = vmatmul.mubr.bf16.gmra.mrb[0].mxu0 %v1981
      %v2073 = vpop.f32.mrb[0].mxu0
      %v2074 = vadd.f32 %v1817, %v2073
      %v2075 = vpop.f32.mrb[0].mxu0
      %v2076 = vpop.f32.mrb[0].mxu0
      %v2077 = vadd.f32 %v1817, %v2076
      %v2078 = vpop.f32.mrb[0].mxu0
      %2079 = vdwg.mxu0
      %v2080 = vmax.f32 %v2018, 0.0
      %v2081 = vmax.f32 %v2021, 0.0
      %v2082 = vmax.f32 %v2026, 0.0
      %v2083 = vmax.f32 %v2029, 0.0
      %v2084 = vmax.f32 %v2034, 0.0
      %v2085 = vmax.f32 %v2037, 0.0
      %v2086 = vmax.f32 %v2042, 0.0
      %v2087 = vmax.f32 %v2045, 0.0
      %v2088 = vmax.f32 %v2050, 0.0
      %v2089 = vmax.f32 %v2053, 0.0
      %v2090 = vmax.f32 %v2058, 0.0
      %v2091 = vmax.f32 %v2061, 0.0
      %v2092 = vmax.f32 %v2066, 0.0
      %v2093 = vmax.f32 %v2069, 0.0
      %v2094 = vmax.f32 %v2074, 0.0
      %v2095 = vmax.f32 %v2077, 0.0
      %v2097 = vsel %vm1135, %v1658, 0
      %v2100 = vsel %vm1135, %v1659, 0
      %v2103 = vsel %vm1135, %v1660, 0
      %v2106 = vsel %vm1135, %v1661, 0
      %v2109 = vsel %vm1135, %v1662, 0
      %v2112 = vsel %vm1135, %v1663, 0
      %v2115 = vsel %vm1135, %v1664, 0
      %v2118 = vsel %vm1135, %v1665, 0
      %2120 = vmatprep.subr.bf16.mxu0 0
      %2121 = vmatpush1.bf16.msra.mxu0 %v1844
      %2122 = vmatprep.subr.bf16.mxu0 0
      %2123 = vmatpush1.bf16.msra.mxu0 0
      %2124 = vmatprep.subr.bf16.mxu0 0
      %2125 = vmatpush1.bf16.msra.mxu0 0
      %2126 = vmatprep.subr.bf16.mxu0 0
      %2127 = vmatpush1.bf16.msra.mxu0 0
      %2128 = vmatprep.subr.bf16.mxu0 0
      %2129 = vmatpush1.bf16.msra.mxu0 0
      %2130 = vmatprep.subr.bf16.mxu0 0
      %2131 = vmatpush1.bf16.msra.mxu0 0
      %2132 = vmatprep.subr.bf16.mxu0 0
      %2133 = vmatpush1.bf16.msra.mxu0 0
      %2134 = vmatprep.subr.bf16.mxu0 0
      %2135 = vmatpush1.bf16.msra.mxu0 0
      %2136 = vmatprep.subr.bf16.mxu0 0
      %2137 = vmatpush1.bf16.msra.mxu0 0
      %2138 = vmatprep.subr.bf16.mxu0 0
      %2139 = vmatpush1.bf16.msra.mxu0 0
      %2140 = vmatprep.subr.bf16.mxu0 0
      %2141 = vmatpush1.bf16.msra.mxu0 0
      %2142 = vmatprep.subr.bf16.mxu0 0
      %2143 = vmatpush1.bf16.msra.mxu0 0
      %2144 = vmatprep.subr.bf16.mxu0 0
      %2145 = vmatpush1.bf16.msra.mxu0 0
      %2146 = vmatprep.subr.bf16.mxu0 0
      %2147 = vmatpush1.bf16.msra.mxu0 0
      %2148 = vmatprep.subr.bf16.mxu0 0
      %2149 = vmatpush1.bf16.msra.mxu0 0
      %2150 = vmatprep.subr.bf16.mxu0 0
      %2151 = vmatpush1.bf16.msra.mxu0 0
      %2152 = vmatprep.mubr.bf16.mxu0 0
      %2153 = vmatmul.mubr.bf16.gmra.mrb[0].mxu0 %v2097
      %v2154 = vpop.f32.mrb[0].mxu0
      %v2155 = vadd.f32 %v1817, %v2154
      %v2156 = vpop.f32.mrb[0].mxu0
      %v2157 = vpop.f32.mrb[0].mxu0
      %v2158 = vadd.f32 %v1817, %v2157
      %v2159 = vpop.f32.mrb[0].mxu0
      %2160 = vmatprep.mubr.bf16.mxu0 0
      %2161 = vmatmul.mubr.bf16.gmra.mrb[0].mxu0 %v2100
      %v2162 = vpop.f32.mrb[0].mxu0
      %v2163 = vadd.f32 %v1817, %v2162
      %v2164 = vpop.f32.mrb[0].mxu0
      %v2165 = vpop.f32.mrb[0].mxu0
      %v2166 = vadd.f32 %v1817, %v2165
      %v2167 = vpop.f32.mrb[0].mxu0
      %2168 = vmatprep.mubr.bf16.mxu0 0
      %2169 = vmatmul.mubr.bf16.gmra.mrb[0].mxu0 %v2103
      %v2170 = vpop.f32.mrb[0].mxu0
      %v2171 = vadd.f32 %v1817, %v2170
      %v2172 = vpop.f32.mrb[0].mxu0
      %v2173 = vpop.f32.mrb[0].mxu0
      %v2174 = vadd.f32 %v1817, %v2173
      %v2175 = vpop.f32.mrb[0].mxu0
      %2176 = vmatprep.mubr.bf16.mxu0 0
      %2177 = vmatmul.mubr.bf16.gmra.mrb[0].mxu0 %v2106
      %v2178 = vpop.f32.mrb[0].mxu0
      %v2179 = vadd.f32 %v1817, %v2178
      %v2180 = vpop.f32.mrb[0].mxu0
      %v2181 = vpop.f32.mrb[0].mxu0
      %v2182 = vadd.f32 %v1817, %v2181
      %v2183 = vpop.f32.mrb[0].mxu0
      %2184 = vmatprep.mubr.bf16.mxu0 0
      %2185 = vmatmul.mubr.bf16.gmra.mrb[0].mxu0 %v2109
      %v2186 = vpop.f32.mrb[0].mxu0
      %v2187 = vadd.f32 %v1817, %v2186
      %v2188 = vpop.f32.mrb[0].mxu0
      %v2189 = vpop.f32.mrb[0].mxu0
      %v2190 = vadd.f32 %v1817, %v2189
      %v2191 = vpop.f32.mrb[0].mxu0
      %2192 = vmatprep.mubr.bf16.mxu0 0
      %2193 = vmatmul.mubr.bf16.gmra.mrb[0].mxu0 %v2112
      %v2194 = vpop.f32.mrb[0].mxu0
      %v2195 = vadd.f32 %v1817, %v2194
      %v2196 = vpop.f32.mrb[0].mxu0
      %v2197 = vpop.f32.mrb[0].mxu0
      %v2198 = vadd.f32 %v1817, %v2197
      %v2199 = vpop.f32.mrb[0].mxu0
      %2200 = vmatprep.mubr.bf16.mxu0 0
      %2201 = vmatmul.mubr.bf16.gmra.mrb[0].mxu0 %v2115
      %v2202 = vpop.f32.mrb[0].mxu0
      %v2203 = vadd.f32 %v1817, %v2202
      %v2204 = vpop.f32.mrb[0].mxu0
      %v2205 = vpop.f32.mrb[0].mxu0
      %v2206 = vadd.f32 %v1817, %v2205
      %v2207 = vpop.f32.mrb[0].mxu0
      %2208 = vmatprep.mubr.bf16.mxu0 0
      %2209 = vmatmul.mubr.bf16.gmra.mrb[0].mxu0 %v2118
      %v2210 = vpop.f32.mrb[0].mxu0
      %v2211 = vadd.f32 %v1817, %v2210
      %v2212 = vpop.f32.mrb[0].mxu0
      %v2213 = vpop.f32.mrb[0].mxu0
      %v2214 = vadd.f32 %v1817, %v2213
      %v2215 = vpop.f32.mrb[0].mxu0
      %2216 = vdwg.mxu0
      %v2217 = vmax.f32 %v2155, 0.0
      %v2218 = vmax.f32 %v2158, 0.0
      %v2219 = vmax.f32 %v2163, 0.0
      %v2220 = vmax.f32 %v2166, 0.0
      %v2221 = vmax.f32 %v2171, 0.0
      %v2222 = vmax.f32 %v2174, 0.0
      %v2223 = vmax.f32 %v2179, 0.0
      %v2224 = vmax.f32 %v2182, 0.0
      %v2225 = vmax.f32 %v2187, 0.0
      %v2226 = vmax.f32 %v2190, 0.0
      %v2227 = vmax.f32 %v2195, 0.0
      %v2228 = vmax.f32 %v2198, 0.0
      %v2229 = vmax.f32 %v2203, 0.0
      %v2230 = vmax.f32 %v2206, 0.0
      %v2231 = vmax.f32 %v2211, 0.0
      %v2232 = vmax.f32 %v2214, 0.0
      %v2234 = vsel %vm1135, %v1803, 0
      %v2237 = vsel %vm1135, %v1804, 0
      %v2240 = vsel %vm1135, %v1805, 0
      %v2243 = vsel %vm1135, %v1806, 0
      %v2246 = vsel %vm1135, %v1807, 0
      %v2249 = vsel %vm1135, %v1808, 0
      %v2252 = vsel %vm1135, %v1809, 0
      %v2255 = vsel %vm1135, %v1810, 0
      %2257 = vmatprep.subr.bf16.mxu0 0
      %2258 = vmatpush1.bf16.msra.mxu0 %v1844
      %2259 = vmatprep.subr.bf16.mxu0 0
      %2260 = vmatpush1.bf16.msra.mxu0 0
      %2261 = vmatprep.subr.bf16.mxu0 0
      %2262 = vmatpush1.bf16.msra.mxu0 0
      %2263 = vmatprep.subr.bf16.mxu0 0
      %2264 = vmatpush1.bf16.msra.mxu0 0
      %2265 = vmatprep.subr.bf16.mxu0 0
      %2266 = vmatpush1.bf16.msra.mxu0 0
      %2267 = vmatprep.subr.bf16.mxu0 0
      %2268 = vmatpush1.bf16.msra.mxu0 0
      %2269 = vmatprep.subr.bf16.mxu0 0
      %2270 = vmatpush1.bf16.msra.mxu0 0
      %2271 = vmatprep.subr.bf16.mxu0 0
      %2272 = vmatpush1.bf16.msra.mxu0 0
      %2273 = vmatprep.subr.bf16.mxu0 0
      %2274 = vmatpush1.bf16.msra.mxu0 0
      %2275 = vmatprep.subr.bf16.mxu0 0
      %2276 = vmatpush1.bf16.msra.mxu0 0
      %2277 = vmatprep.subr.bf16.mxu0 0
      %2278 = vmatpush1.bf16.msra.mxu0 0
      %2279 = vmatprep.subr.bf16.mxu0 0
      %2280 = vmatpush1.bf16.msra.mxu0 0
      %2281 = vmatprep.subr.bf16.mxu0 0
      %2282 = vmatpush1.bf16.msra.mxu0 0
      %2283 = vmatprep.subr.bf16.mxu0 0
      %2284 = vmatpush1.bf16.msra.mxu0 0
      %2285 = vmatprep.subr.bf16.mxu0 0
      %2286 = vmatpush1.bf16.msra.mxu0 0
      %2287 = vmatprep.subr.bf16.mxu0 0
      %2288 = vmatpush1.bf16.msra.mxu0 0
      %2289 = vmatprep.mubr.bf16.mxu0 0
      %2290 = vmatmul.mubr.bf16.gmra.mrb[0].mxu0 %v2234
      %v2291 = vpop.f32.mrb[0].mxu0
      %v2292 = vadd.f32 %v1817, %v2291
      %v2293 = vpop.f32.mrb[0].mxu0
      %v2294 = vpop.f32.mrb[0].mxu0
      %v2295 = vadd.f32 %v1817, %v2294
      %v2296 = vpop.f32.mrb[0].mxu0
      %2297 = vmatprep.mubr.bf16.mxu0 0
      %2298 = vmatmul.mubr.bf16.gmra.mrb[0].mxu0 %v2237
      %v2299 = vpop.f32.mrb[0].mxu0
      %v2300 = vadd.f32 %v1817, %v2299
      %v2301 = vpop.f32.mrb[0].mxu0
      %v2302 = vpop.f32.mrb[0].mxu0
      %v2303 = vadd.f32 %v1817, %v2302
      %v2304 = vpop.f32.mrb[0].mxu0
      %2305 = vmatprep.mubr.bf16.mxu0 0
      %2306 = vmatmul.mubr.bf16.gmra.mrb[0].mxu0 %v2240
      %v2307 = vpop.f32.mrb[0].mxu0
      %v2308 = vadd.f32 %v1817, %v2307
      %v2309 = vpop.f32.mrb[0].mxu0
      %v2310 = vpop.f32.mrb[0].mxu0
      %v2311 = vadd.f32 %v1817, %v2310
      %v2312 = vpop.f32.mrb[0].mxu0
      %2313 = vmatprep.mubr.bf16.mxu0 0
      %2314 = vmatmul.mubr.bf16.gmra.mrb[0].mxu0 %v2243
      %v2315 = vpop.f32.mrb[0].mxu0
      %v2316 = vadd.f32 %v1817, %v2315
      %v2317 = vpop.f32.mrb[0].mxu0
      %v2318 = vpop.f32.mrb[0].mxu0
      %v2319 = vadd.f32 %v1817, %v2318
      %v2320 = vpop.f32.mrb[0].mxu0
      %2321 = vmatprep.mubr.bf16.mxu0 0
      %2322 = vmatmul.mubr.bf16.gmra.mrb[0].mxu0 %v2246
      %v2323 = vpop.f32.mrb[0].mxu0
      %v2324 = vadd.f32 %v1817, %v2323
      %v2325 = vpop.f32.mrb[0].mxu0
      %v2326 = vpop.f32.mrb[0].mxu0
      %v2327 = vadd.f32 %v1817, %v2326
      %v2328 = vpop.f32.mrb[0].mxu0
      %2329 = vmatprep.mubr.bf16.mxu0 0
      %2330 = vmatmul.mubr.bf16.gmra.mrb[0].mxu0 %v2249
      %v2331 = vpop.f32.mrb[0].mxu0
      %v2332 = vadd.f32 %v1817, %v2331
      %v2333 = vpop.f32.mrb[0].mxu0
      %v2334 = vpop.f32.mrb[0].mxu0
      %v2335 = vadd.f32 %v1817, %v2334
      %v2336 = vpop.f32.mrb[0].mxu0
      %2337 = vmatprep.mubr.bf16.mxu0 0
      %2338 = vmatmul.mubr.bf16.gmra.mrb[0].mxu0 %v2252
      %v2339 = vpop.f32.mrb[0].mxu0
      %v2340 = vadd.f32 %v1817, %v2339
      %v2341 = vpop.f32.mrb[0].mxu0
      %v2342 = vpop.f32.mrb[0].mxu0
      %v2343 = vadd.f32 %v1817, %v2342
      %v2344 = vpop.f32.mrb[0].mxu0
      %2345 = vmatprep.mubr.bf16.mxu0 0
      %2346 = vmatmul.mubr.bf16.gmra.mrb[0].mxu0 %v2255
      %v2347 = vpop.f32.mrb[0].mxu0
      %v2348 = vadd.f32 %v1817, %v2347
      %v2349 = vpop.f32.mrb[0].mxu0
      %v2350 = vpop.f32.mrb[0].mxu0
      %v2351 = vadd.f32 %v1817, %v2350
      %v2352 = vpop.f32.mrb[0].mxu0
      %2353 = vdwg.mxu0
      %v2354 = vmax.f32 %v2292, 0.0
      %v2355 = vmax.f32 %v2295, 0.0
      %v2356 = vmax.f32 %v2300, 0.0
      %v2357 = vmax.f32 %v2303, 0.0
      %v2358 = vmax.f32 %v2308, 0.0
      %v2359 = vmax.f32 %v2311, 0.0
      %v2360 = vmax.f32 %v2316, 0.0
      %v2361 = vmax.f32 %v2319, 0.0
      %v2362 = vmax.f32 %v2324, 0.0
      %v2363 = vmax.f32 %v2327, 0.0
      %v2364 = vmax.f32 %v2332, 0.0
      %v2365 = vmax.f32 %v2335, 0.0
      %v2366 = vmax.f32 %v2340, 0.0
      %v2367 = vmax.f32 %v2343, 0.0
      %v2368 = vmax.f32 %v2348, 0.0
      %v2369 = vmax.f32 %v2351, 0.0
      %2386 = vrot.lane.b32.xlu0 %v2080, 8
      %v2387 = vpop.permute.xlu0 %2386
      %2388 = vrot.lane.b32.xlu0 %v2081, 8
      %v2389 = vpop.permute.xlu0 %2388
      %2390 = vrot.lane.b32.xlu0 %v2082, 8
      %v2391 = vpop.permute.xlu0 %2390
      %2392 = vrot.lane.b32.xlu0 %v2083, 8
      %v2393 = vpop.permute.xlu0 %2392
      %2394 = vrot.lane.b32.xlu0 %v2084, 8
      %v2395 = vpop.permute.xlu0 %2394
      %2396 = vrot.lane.b32.xlu0 %v2085, 8
      %v2397 = vpop.permute.xlu0 %2396
      %2398 = vrot.lane.b32.xlu0 %v2086, 8
      %v2399 = vpop.permute.xlu0 %2398
      %2400 = vrot.lane.b32.xlu0 %v2087, 8
      %v2401 = vpop.permute.xlu0 %2400
      %2402 = vrot.lane.b32.xlu0 %v2088, 8
      %v2403 = vpop.permute.xlu0 %2402
      %2404 = vrot.lane.b32.xlu0 %v2089, 8
      %v2405 = vpop.permute.xlu0 %2404
      %2406 = vrot.lane.b32.xlu0 %v2090, 8
      %v2407 = vpop.permute.xlu0 %2406
      %2408 = vrot.lane.b32.xlu0 %v2091, 8
      %v2409 = vpop.permute.xlu0 %2408
      %2410 = vrot.lane.b32.xlu0 %v2092, 8
      %v2411 = vpop.permute.xlu0 %2410
      %2412 = vrot.lane.b32.xlu0 %v2093, 8
      %v2413 = vpop.permute.xlu0 %2412
      %2414 = vrot.lane.b32.xlu0 %v2094, 8
      %v2415 = vpop.permute.xlu0 %2414
      %2416 = vrot.lane.b32.xlu0 %v2095, 8
      %v2417 = vpop.permute.xlu0 %2416
      %2450 = vrot.lane.b32.xlu0 %v2217, 16
      %v2451 = vpop.permute.xlu0 %2450
      %2452 = vrot.lane.b32.xlu0 %v2218, 16
      %v2453 = vpop.permute.xlu0 %2452
      %2454 = vrot.lane.b32.xlu0 %v2219, 16
      %v2455 = vpop.permute.xlu0 %2454
      %2456 = vrot.lane.b32.xlu0 %v2220, 16
      %v2457 = vpop.permute.xlu0 %2456
      %2458 = vrot.lane.b32.xlu0 %v2221, 16
      %v2459 = vpop.permute.xlu0 %2458
      %2460 = vrot.lane.b32.xlu0 %v2222, 16
      %v2461 = vpop.permute.xlu0 %2460
      %2462 = vrot.lane.b32.xlu0 %v2223, 16
      %v2463 = vpop.permute.xlu0 %2462
      %2464 = vrot.lane.b32.xlu0 %v2224, 16
      %v2465 = vpop.permute.xlu0 %2464
      %2466 = vrot.lane.b32.xlu0 %v2225, 16
      %v2467 = vpop.permute.xlu0 %2466
      %2468 = vrot.lane.b32.xlu0 %v2226, 16
      %v2469 = vpop.permute.xlu0 %2468
      %2470 = vrot.lane.b32.xlu0 %v2227, 16
      %v2471 = vpop.permute.xlu0 %2470
      %2472 = vrot.lane.b32.xlu0 %v2228, 16
      %v2473 = vpop.permute.xlu0 %2472
      %2474 = vrot.lane.b32.xlu0 %v2229, 16
      %v2475 = vpop.permute.xlu0 %2474
      %2476 = vrot.lane.b32.xlu0 %v2230, 16
      %v2477 = vpop.permute.xlu0 %2476
      %2478 = vrot.lane.b32.xlu0 %v2231, 16
      %v2479 = vpop.permute.xlu0 %2478
      %2480 = vrot.lane.b32.xlu0 %v2232, 16
      %v2481 = vpop.permute.xlu0 %2480
      %2514 = vrot.lane.b32.xlu0 %v2354, 24
      %v2515 = vpop.permute.xlu0 %2514
      %2516 = vrot.lane.b32.xlu0 %v2355, 24
      %v2517 = vpop.permute.xlu0 %2516
      %2518 = vrot.lane.b32.xlu0 %v2356, 24
      %v2519 = vpop.permute.xlu0 %2518
      %2520 = vrot.lane.b32.xlu0 %v2357, 24
      %v2521 = vpop.permute.xlu0 %2520
      %2522 = vrot.lane.b32.xlu0 %v2358, 24
      %v2523 = vpop.permute.xlu0 %2522
      %2524 = vrot.lane.b32.xlu0 %v2359, 24
      %v2525 = vpop.permute.xlu0 %2524
      %2526 = vrot.lane.b32.xlu0 %v2360, 24
      %v2527 = vpop.permute.xlu0 %2526
      %2528 = vrot.lane.b32.xlu0 %v2361, 24
      %v2529 = vpop.permute.xlu0 %2528
      %2530 = vrot.lane.b32.xlu0 %v2362, 24
      %v2531 = vpop.permute.xlu0 %2530
      %2532 = vrot.lane.b32.xlu0 %v2363, 24
      %v2533 = vpop.permute.xlu0 %2532
      %2534 = vrot.lane.b32.xlu0 %v2364, 24
      %v2535 = vpop.permute.xlu0 %2534
      %2536 = vrot.lane.b32.xlu0 %v2365, 24
      %v2537 = vpop.permute.xlu0 %2536
      %2538 = vrot.lane.b32.xlu0 %v2366, 24
      %v2539 = vpop.permute.xlu0 %2538
      %2540 = vrot.lane.b32.xlu0 %v2367, 24
      %v2541 = vpop.permute.xlu0 %2540
      %2542 = vrot.lane.b32.xlu0 %v2368, 24
      %v2543 = vpop.permute.xlu0 %2542
      %2544 = vrot.lane.b32.xlu0 %v2369, 24
      %v2545 = vpop.permute.xlu0 %2544
      %v2562 = vsel %vm1152, %v1943, %v2387
      %v2563 = vsel %vm1152, %v1944, %v2389
      %v2564 = vsel %vm1152, %v1945, %v2391
      %v2565 = vsel %vm1152, %v1946, %v2393
      %v2566 = vsel %vm1152, %v1947, %v2395
      %v2567 = vsel %vm1152, %v1948, %v2397
      %v2568 = vsel %vm1152, %v1949, %v2399
      %v2569 = vsel %vm1152, %v1950, %v2401
      %v2570 = vsel %vm1152, %v1951, %v2403
      %v2571 = vsel %vm1152, %v1952, %v2405
      %v2572 = vsel %vm1152, %v1953, %v2407
      %v2573 = vsel %vm1152, %v1954, %v2409
      %v2574 = vsel %vm1152, %v1955, %v2411
      %v2575 = vsel %vm1152, %v1956, %v2413
      %v2576 = vsel %vm1152, %v1957, %v2415
      %v2577 = vsel %vm1152, %v1958, %v2417
      %v2578 = vsel %vm593, %v2562, %v2451
      %v2579 = vsel %vm593, %v2563, %v2453
      %v2580 = vsel %vm593, %v2564, %v2455
      %v2581 = vsel %vm593, %v2565, %v2457
      %v2582 = vsel %vm593, %v2566, %v2459
      %v2583 = vsel %vm593, %v2567, %v2461
      %v2584 = vsel %vm593, %v2568, %v2463
      %v2585 = vsel %vm593, %v2569, %v2465
      %v2586 = vsel %vm593, %v2570, %v2467
      %v2587 = vsel %vm593, %v2571, %v2469
      %v2588 = vsel %vm593, %v2572, %v2471
      %v2589 = vsel %vm593, %v2573, %v2473
      %v2590 = vsel %vm593, %v2574, %v2475
      %v2591 = vsel %vm593, %v2575, %v2477
      %v2592 = vsel %vm593, %v2576, %v2479
      %v2593 = vsel %vm593, %v2577, %v2481
      %vm2594 = vcmask 195584
      %v2595 = vsel %vm2594, %v2578, %v2515
      %v2596 = vsel %vm2594, %v2579, %v2517
      %v2597 = vsel %vm2594, %v2580, %v2519
      %v2598 = vsel %vm2594, %v2581, %v2521
      %v2599 = vsel %vm2594, %v2582, %v2523
      %v2600 = vsel %vm2594, %v2583, %v2525
      %v2601 = vsel %vm2594, %v2584, %v2527
      %v2602 = vsel %vm2594, %v2585, %v2529
      %v2603 = vsel %vm2594, %v2586, %v2531
      %v2604 = vsel %vm2594, %v2587, %v2533
      %v2605 = vsel %vm2594, %v2588, %v2535
      %v2606 = vsel %vm2594, %v2589, %v2537
      %v2607 = vsel %vm2594, %v2590, %v2539
      %v2608 = vsel %vm2594, %v2591, %v2541
      %v2609 = vsel %vm2594, %v2592, %v2543
      %v2610 = vsel %vm2594, %v2593, %v2545
      %v2611 = vld [vmem:[%s541] sm:$0xff]
      %v2612 = vld [vmem:[%s541 + $0x8] sm:$0xff]
      %v2613 = vld [vmem:[%s541 + $0x10] sm:$0xff]
      %v2614 = vld [vmem:[%s541 + $0x18] sm:$0xff]
      %v2615 = vld [vmem:[%s541 + $0x20] sm:$0xff]
      %v2616 = vld [vmem:[%s541 + $0x28] sm:$0xff]
      %v2617 = vld [vmem:[%s541 + $0x30] sm:$0xff]
      %v2618 = vld [vmem:[%s541 + $0x38] sm:$0xff]
      %v2619 = vld [vmem:[%s541 + $0x40] sm:$0xff]
      %v2620 = vld [vmem:[%s541 + $0x48] sm:$0xff]
      %v2621 = vld [vmem:[%s541 + $0x50] sm:$0xff]
      %v2622 = vld [vmem:[%s541 + $0x58] sm:$0xff]
      %v2623 = vld [vmem:[%s541 + $0x60] sm:$0xff]
      %v2624 = vld [vmem:[%s541 + $0x68] sm:$0xff]
      %v2625 = vld [vmem:[%s541 + $0x70] sm:$0xff]
      %v2626 = vld [vmem:[%s541 + $0x78] sm:$0xff]
      %v2627 = vadd.f32 %v2595, %v2611
      %v2628 = vadd.f32 %v2596, %v2612
      %v2629 = vadd.f32 %v2597, %v2613
      %v2630 = vadd.f32 %v2598, %v2614
      %v2631 = vadd.f32 %v2599, %v2615
      %v2632 = vadd.f32 %v2600, %v2616
      %v2633 = vadd.f32 %v2601, %v2617
      %v2634 = vadd.f32 %v2602, %v2618
      %v2635 = vadd.f32 %v2603, %v2619
      %v2636 = vadd.f32 %v2604, %v2620
      %v2637 = vadd.f32 %v2605, %v2621
      %v2638 = vadd.f32 %v2606, %v2622
      %v2639 = vadd.f32 %v2607, %v2623
      %v2640 = vadd.f32 %v2608, %v2624
      %v2641 = vadd.f32 %v2609, %v2625
      %v2642 = vadd.f32 %v2610, %v2626
      %vm2643 = vcmask 261120
      %2644 = vst.msk [vmem:[%s551] sm:$0xff] %vm2643, %v2627
      %2645 = vst.msk [vmem:[%s551 + $0x8] sm:$0xff] %vm2643, %v2628
      %2646 = vst.msk [vmem:[%s551 + $0x10] sm:$0xff] %vm2643, %v2629
      %2647 = vst.msk [vmem:[%s551 + $0x18] sm:$0xff] %vm2643, %v2630
      %2648 = vst.msk [vmem:[%s551 + $0x20] sm:$0xff] %vm2643, %v2631
      %2649 = vst.msk [vmem:[%s551 + $0x28] sm:$0xff] %vm2643, %v2632
      %2650 = vst.msk [vmem:[%s551 + $0x30] sm:$0xff] %vm2643, %v2633
      %2651 = vst.msk [vmem:[%s551 + $0x38] sm:$0xff] %vm2643, %v2634
      %2652 = vst.msk [vmem:[%s551 + $0x40] sm:$0xff] %vm2643, %v2635
      %2653 = vst.msk [vmem:[%s551 + $0x48] sm:$0xff] %vm2643, %v2636
      %2654 = vst.msk [vmem:[%s551 + $0x50] sm:$0xff] %vm2643, %v2637
      %2655 = vst.msk [vmem:[%s551 + $0x58] sm:$0xff] %vm2643, %v2638
      %2656 = vst.msk [vmem:[%s551 + $0x60] sm:$0xff] %vm2643, %v2639
      %2657 = vst.msk [vmem:[%s551 + $0x68] sm:$0xff] %vm2643, %v2640
      %2658 = vst.msk [vmem:[%s551 + $0x70] sm:$0xff] %vm2643, %v2641
      %2659 = vst.msk [vmem:[%s551 + $0x78] sm:$0xff] %vm2643, %v2642
      %s2660 = smul.u32 16, %s28
      %p2661 = scmp.lt.s32.totalorder %s27, 1
      %s2662 = scalar_select %p2661, %s27, 1
      %p2663 = scmp.lt.s32.totalorder %s2660, 31
      %s2664 = scalar_select %p2663, %s2660, 31
      %s2665 = smul.addr %s2662, 32
      %s2666 = sadd.s32 %s2664, %s2665
      %s2667 = smul.addr %s2666, 8
      %s2668 = scalar_lea.vmem %s12, %s2667
      // Predicated region
      $region69: #{tpu_custom_call.1} parent=67 // pred_check
        %p2669 = pneg %p336
      $region70: #{tpu_custom_call.1} parent=67 // pred_check_branch
        %2671 = sbr.rel (%p2669) target = $region72
      $region71: #{tpu_custom_call.1} parent=67 // pred_region
        %s2672 = smul.u32 16, %s28
      $region72: #{tpu_custom_call.1} parent=67 // pred_fallthru
        _
    $region68: #{tpu_custom_call.1} parent=5 // pred_fallthru
      _
    %p2673 = scmp.le.s32.totalorder 2, %s18
    // Predicated region
    $region73: #{tpu_custom_call.1} parent=5 // pred_check
      %p2674 = pneg %p2673
    $region74: #{tpu_custom_call.1} parent=5 // pred_check_branch
      %2676 = sbr.rel (%p2674) target = $region76
    $region75: #{tpu_custom_call.1} parent=5 // pred_region
      %s2677 = ssub.s32 %s18, 2
      // Predicated region
      $region77: #{tpu_custom_call.1} parent=75 // pred_check
        %p2678 = pneg %p342
      $region78: #{tpu_custom_call.1} parent=75 // pred_check_branch
        %2680 = sbr.rel (%p2678) target = $region80
      $region79: #{tpu_custom_call.1} parent=75 // pred_region
        %s2681 = smul.u32 16, %s30
        %p2682 = scmp.lt.s32.totalorder %s29, 1
        %s2683 = scalar_select %p2682, %s29, 1
        %p2684 = scmp.lt.s32.totalorder %s2681, 31
        %s2685 = scalar_select %p2684, %s2681, 31
        %s2686 = smul.addr %s2683, 32
        %s2687 = sadd.s32 %s2685, %s2686
        %s2688 = smul.addr %s2687, 8
        %s2689 = scalar_lea.vmem %s12, %s2688
      $region80: #{tpu_custom_call.1} parent=75 // pred_fallthru
        _
    $region76: #{tpu_custom_call.1} parent=5 // pred_fallthru
      _
  $region6: #{tpu_custom_call.1} parent=0 // loop_footer
    %s22 = sadd.s32 1, %s18
  $region7: #{tpu_custom_call.1} parent=0 // loop_footer_branch
    %17 = sbr.rel target = $region3
  $region8: #{tpu_custom_call.1} parent=0 // loop_exit
    _

</llo_original>
